<compile_context>
chip_gen: v7x
topology: tpu7x:2x2x1
jax: 0.10.0
libtpu: 0.0.40
codegen_flags: <defaults>
</compile_context>

<pallas_src>
import math

import numpy as np
import jax
import jax.numpy as jnp
from jax.experimental import pallas as pl


# ----------------------------- the Pallas kernel -----------------------------------

def transformer_kernel(tok_ref, mask_ref, emb_ref, pe_ref,
                       wqkv_ref, wo_ref, w1_ref, w2_ref, dvec_ref, b1_ref,
                       whead_ref, bhead_ref,
                       xvec_ref, logits_ref, attn_ref):
    B, S = mask_ref.shape
    V, D = emb_ref.shape
    M = B * S

    # ---- Embedder (the spec module): frozen-table lookup, fused in-kernel -------
    # one-hot (M,V) @ table (V,D) reproduces the gather exactly in f32.
    tok = tok_ref[...]                                              # (M, 1) int32
    vocab_ids = jax.lax.broadcasted_iota(jnp.int32, (M, V), 1)
    onehot = (vocab_ids == tok).astype(jnp.float32)
    x_vec = jnp.dot(onehot, emb_ref[...],
                    preferred_element_type=jnp.float32)             # (M, D)
    xvec_ref[...] = x_vec.reshape(B, S, D)                          # Embedder output

    # ---- PositionalEncoder: sqrt(d_model) * x + pe -------------------------------
    x = x_vec * math.sqrt(D) + jnp.tile(pe_ref[...], (B, 1))        # (M, D)

    # ---- mask -> additive bias, computed ONCE for both blocks --------------------
    mask = mask_ref[...]                                            # (B, S) int32
    neg_bias = jnp.where(mask == 0, jnp.float32(-1e9),
                         jnp.float32(0.0))[:, None, :]              # (B, 1, S)

    def layernorm(y, g, b, eps=1e-5):
        mu = jnp.mean(y, axis=-1, keepdims=True)
        var = jnp.mean(y * y, axis=-1, keepdims=True) - mu * mu     # one-pass var
        return (y - mu) * jax.lax.rsqrt(var + eps) * g + b

    inv_sqrt_d = 1.0 / math.sqrt(D)

    for blk in range(2):                      # static unroll: 2 transformer blocks
        wqkv = wqkv_ref[blk]                  # (D, 3D)  fused [Wq | Wk | Wv]
        wo = wo_ref[blk]                      # (D, D)
        w1 = w1_ref[blk]                      # (D, F)
        w2 = w2_ref[blk]                      # (F, D)
        dv = dvec_ref[blk]                    # (9, D) packed small params
        b1 = b1_ref[blk]                      # (1, F)
        ln1_g, ln1_b = dv[0:1], dv[1:2]
        bq, bk, bv = dv[2:3], dv[3:4], dv[4:5]
        bo, ln2_g, ln2_b, b2 = dv[5:6], dv[6:7], dv[7:8], dv[8:9]

        xn = layernorm(x, ln1_g, ln1_b)
        qkv = jnp.dot(xn, wqkv, preferred_element_type=jnp.float32)  # (M, 3D)
        q = (qkv[:, 0 * D:1 * D] + bq).reshape(B, S, D)
        k = (qkv[:, 1 * D:2 * D] + bk).reshape(B, S, D)
        v = (qkv[:, 2 * D:3 * D] + bv).reshape(B, S, D)

        scores = jnp.einsum('bqd,bkd->bqk', q, k,
                            preferred_element_type=jnp.float32) * inv_sqrt_d
        scores = scores + neg_bias
        m = jnp.max(scores, axis=-1, keepdims=True)
        e = jnp.exp(scores - m)
        attn = e * pl.reciprocal(jnp.sum(e, axis=-1, keepdims=True), approx=True)
        attn_ref[blk] = attn                   # packed (2, B, S, S) output

        ctx = jnp.einsum('bqk,bkd->bqd', attn, v,
                         preferred_element_type=jnp.float32).reshape(M, D)
        x = x + jnp.dot(ctx, wo, preferred_element_type=jnp.float32) + bo
        xn2 = layernorm(x, ln2_g, ln2_b)
        h = jnp.maximum(jnp.dot(xn2, w1, preferred_element_type=jnp.float32) + b1,
                        0.0)
        x = x + jnp.dot(h, w2, preferred_element_type=jnp.float32) + b2

    # ---- ClassificationHead on token 0 -------------------------------------------
    x0 = x.reshape(B, S, D)[:, 0, :]                                 # (B, D)
    logits_ref[...] = (jnp.dot(x0, whead_ref[...],
                               preferred_element_type=jnp.float32) + bhead_ref[...])


# ----------------------------- wrapper ---------------------------------------------

def pack_params(params):
    """One-time weight packing: fused QKV, stacked blocks, packed small vectors."""
    def pack_block(p):
        wqkv = jnp.concatenate([p['wq'], p['wk'], p['wv']], axis=1)      # (D, 3D)
        dvec = jnp.concatenate([p['ln1_g'], p['ln1_b'], p['bq'], p['bk'],
                                p['bv'], p['bo'], p['ln2_g'], p['ln2_b'],
                                p['b2']], axis=0)                        # (9, D)
        return wqkv, p['wo'], p['w1'], p['w2'], dvec, p['b1']

    bp1 = pack_block(params['block1'])
    bp2 = pack_block(params['block2'])
    return {
        'embedding': params['embedding'],
        'pe': params['pe'],
        'wqkv': jnp.stack([bp1[0], bp2[0]]),   # (2, D, 3D)
        'wo':   jnp.stack([bp1[1], bp2[1]]),   # (2, D, D)
        'w1':   jnp.stack([bp1[2], bp2[2]]),   # (2, D, F)
        'w2':   jnp.stack([bp1[3], bp2[3]]),   # (2, F, D)
        'dvec': jnp.stack([bp1[4], bp2[4]]),   # (2, 9, D)
        'b1':   jnp.stack([bp1[5], bp2[5]]),   # (2, 1, F)
        'w_head': params['w_head'],            # (D, O)
        'b_head': params['b_head'],            # (1, O)
    }


@jax.jit
def transformer_forward(tokens, mask, packed):
    """tokens: (B,S) int32 ids; mask: (B,S) int32 (1 = keep, 0 = pad)."""
    B, S = tokens.shape
    V, D = packed['embedding'].shape
    O = packed['w_head'].shape[-1]

    out_shape = (
        jax.ShapeDtypeStruct((B, S, D), jnp.float32),     # x_vec (Embedder output)
        jax.ShapeDtypeStruct((B, O), jnp.float32),        # logits
        jax.ShapeDtypeStruct((2, B, S, S), jnp.float32),  # attention weights (both blocks)
    )
    # Single gridless program: entire working set (<300 KiB) lives in VMEM; on v7x
    # a grid=(B,) "parallel" split across the 2 TCs was considered but the kernel
    # is latency-bound at this size, so the collapsed grid is kept.
    x_vec, logits, attn = pl.pallas_call(
        transformer_kernel,
        out_shape=out_shape,
    )(tokens.reshape(B * S, 1).astype(jnp.int32),
      mask.astype(jnp.int32),
      packed['embedding'], packed['pe'],
      packed['wqkv'], packed['wo'], packed['w1'], packed['w2'],
      packed['dvec'], packed['b1'], packed['w_head'], packed['b_head'])

    return x_vec, logits, attn[0], attn[1]


# ----------------------------- pure-JAX reference (for verification) ---------------

def reference_forward(tokens, mask, params):
    x = params['embedding'][tokens]
    B, S, D = x.shape
    x = math.sqrt(D) * x + params['pe'][None, :, :]
    mask3 = mask.reshape(B, 1, S)

    def layernorm(y, g, b, eps=1e-5):
        mu = jnp.mean(y, axis=-1, keepdims=True)
        var = jnp.mean((y - mu) ** 2, axis=-1, keepdims=True)
        return (y - mu) * jax.lax.rsqrt(var + eps) * g + b

    def linear(y, w, b):
        return jnp.einsum('bsd,de->bse', y, w) + b

    def block(x_in, p):
        xn = layernorm(x_in, p['ln1_g'], p['ln1_b'])
        q = linear(xn, p['wq'], p['bq'])
        k = linear(xn, p['wk'], p['bk'])
        v = linear(xn, p['wv'], p['bv'])
        scores = jnp.einsum('bqd,bkd->bqk', q, k) / math.sqrt(D)
        scores = jnp.where(mask3 == 0, -1e9, scores)
        attn = jax.nn.softmax(scores, axis=-1)
        out = linear(jnp.einsum('bqk,bkd->bqd', attn, v), p['wo'], p['bo'])
        x2 = x_in + out
        xn2 = layernorm(x2, p['ln2_g'], p['ln2_b'])
        ff = linear(jnp.maximum(linear(xn2, p['w1'], p['b1']), 0.0),
                    p['w2'], p['b2'])
        return x2 + ff, attn

    x1, aw1 = block(x, params['block1'])
    x2, aw2 = block(x1, params['block2'])
    logits = x2[:, 0, :] @ params['w_head'] + params['b_head']
    return logits, aw1, aw2


# ----------------------------- deterministic parameter init ------------------------

def make_params(key, vocab, d_model, d_ff, out_dim, max_seq_len):
    keys = iter(jax.random.split(key, 64))

    def nrm(shape, std=0.02):
        return (std * jax.random.normal(next(keys), shape)).astype(jnp.float32)

    def make_block():
        return {
            'ln1_g': jnp.ones((1, d_model), jnp.float32),
            'ln1_b': jnp.zeros((1, d_model), jnp.float32),
            'wq': nrm((d_model, d_model)), 'bq': nrm((1, d_model)),
            'wk': nrm((d_model, d_model)), 'bk': nrm((1, d_model)),
            'wv': nrm((d_model, d_model)), 'bv': nrm((1, d_model)),
            'wo': nrm((d_model, d_model)), 'bo': nrm((1, d_model)),
            'ln2_g': jnp.ones((1, d_model), jnp.float32),
            'ln2_b': jnp.zeros((1, d_model), jnp.float32),
            'w1': nrm((d_model, d_ff)), 'b1': nrm((1, d_ff)),
            'w2': nrm((d_ff, d_model)), 'b2': nrm((1, d_model)),
        }

    # Positional encoding exactly as the PyTorch loop builds it.
    pos = np.arange(max_seq_len, dtype=np.float64)[:, None]
    i_even = np.arange(0, d_model, 2, dtype=np.float64)
    pe = np.zeros((max_seq_len, d_model), dtype=np.float32)
    pe[:, 0::2] = np.sin(pos / 10000 ** (2 * i_even / d_model))
    pe[:, 1::2] = np.cos(pos / 10000 ** (2 * (i_even + 1) / d_model))

    return {
        'embedding': nrm((vocab, d_model), std=1.0),
        'pe': jnp.asarray(pe),
        'block1': make_block(),
        'block2': make_block(),
        'w_head': nrm((d_model, out_dim)),
        'b_head': jnp.zeros((1, out_dim), jnp.float32),
    }


# ----------------------------- main -------------------------------------------------

if __name__ == "__main__":
    VOCAB, D_MODEL, D_FF, OUT_DIM = 50, 32, 64, 3
    B, S = 2, 8   # max_seq_len == S (the torch PositionalEncoder requires this)

    key = jax.random.PRNGKey(0)
    kp, kt = jax.random.split(key)
    params = make_params(kp, VOCAB, D_MODEL, D_FF, OUT_DIM, S)
    packed = pack_params(params)   # one-time weight packing (done once, outside the hot path)

    tokens = jax.random.randint(kt, (B, S), 0, VOCAB, dtype=jnp.int32)
    lengths = jnp.array([S, 5], dtype=jnp.int32)
    mask = (jnp.arange(S)[None, :] < lengths[:, None]).astype(jnp.int32)  # (B, S)

    x_vec, logits, aw1, aw2 = transformer_forward(tokens, mask, packed)
    jax.block_until_ready((x_vec, logits, aw1, aw2))

    # Embedder spec check: the in-kernel one-hot matmul reproduces the gather exactly.
    np.testing.assert_allclose(np.asarray(x_vec),
                               np.asarray(params['embedding'][tokens]),
                               rtol=0.0, atol=1e-6)

    # Full forward check. Tolerance 2e-3 covers the EUP approximate-reciprocal
    # softmax denominator and the one-pass layernorm variance (both well inside it).
    ref_logits, ref_aw1, ref_aw2 = reference_forward(tokens, mask, params)
    np.testing.assert_allclose(np.asarray(logits), np.asarray(ref_logits),
                               rtol=2e-3, atol=2e-3)
    np.testing.assert_allclose(np.asarray(aw1), np.asarray(ref_aw1),
                               rtol=2e-3, atol=2e-3)
    np.testing.assert_allclose(np.asarray(aw2), np.asarray(ref_aw2),
                               rtol=2e-3, atol=2e-3)

    print("KERNEL_OK")
</pallas_src>

<mosaic_0001>
module attributes {stable_mosaic.version = 11 : i64} {
  func.func @transformer_kernel(%arg0: memref<16x1xi32, #tpu.memory_space<vmem>>, %arg1: memref<2x8xi32, #tpu.memory_space<vmem>>, %arg2: memref<50x32xf32, #tpu.memory_space<vmem>>, %arg3: memref<8x32xf32, #tpu.memory_space<vmem>>, %arg4: memref<2x32x96xf32, #tpu.memory_space<vmem>>, %arg5: memref<2x32x32xf32, #tpu.memory_space<vmem>>, %arg6: memref<2x32x64xf32, #tpu.memory_space<vmem>>, %arg7: memref<2x64x32xf32, #tpu.memory_space<vmem>>, %arg8: memref<2x9x32xf32, #tpu.memory_space<vmem>>, %arg9: memref<2x1x64xf32, #tpu.memory_space<vmem>>, %arg10: memref<32x3xf32, #tpu.memory_space<vmem>>, %arg11: memref<1x3xf32, #tpu.memory_space<vmem>>, %arg12: memref<2x8x32xf32, #tpu.memory_space<vmem>>, %arg13: memref<2x3xf32, #tpu.memory_space<vmem>>, %arg14: memref<2x2x8x8xf32, #tpu.memory_space<vmem>>) attributes {dimension_semantics = [], scalar_prefetch = 0 : i64, scratch_operands = 0 : i64, tpu.core_type = #tpu.core_type<tc>} {
    %c0 = arith.constant 0 : index
    %c0_0 = arith.constant 0 : index
    %0 = vector.load %arg0[%c0, %c0_0] : memref<16x1xi32, #tpu.memory_space<vmem>>, vector<16x1xi32>
    %1 = tpu.iota {dimensions = array<i32: 1>} : vector<16x50xi32>
    %2 = vector.broadcast %0 : vector<16x1xi32> to vector<16x50xi32>
    %3 = arith.cmpi eq, %1, %2 : vector<16x50xi32>
    %4 = arith.extui %3 : vector<16x50xi1> to vector<16x50xi32>
    %5 = arith.sitofp %4 : vector<16x50xi32> to vector<16x50xf32>
    %c0_1 = arith.constant 0 : index
    %c0_2 = arith.constant 0 : index
    %6 = vector.load %arg2[%c0_1, %c0_2] : memref<50x32xf32, #tpu.memory_space<vmem>>, vector<50x32xf32>
    %cst = arith.constant dense<0.000000e+00> : vector<16x32xf32>
    %7 = tpu.matmul %5, %6, %cst {dimension_numbers = #tpu.dot_dimension_numbers<[1], [0], [0], [1], [0, 0, 1, 1], [], []>} : vector<16x50xf32>, vector<50x32xf32>, vector<16x32xf32> -> vector<16x32xf32>
    %8 = vector.shape_cast %7 : vector<16x32xf32> to vector<2x8x32xf32>
    %c0_3 = arith.constant 0 : index
    %c0_4 = arith.constant 0 : index
    %c0_5 = arith.constant 0 : index
    %9 = vector.load %arg12[%c0_3, %c0_4, %c0_5] : memref<2x8x32xf32, #tpu.memory_space<vmem>>, vector<2x8x32xf32>
    tpu.vector_store %arg12[%c0_3, %c0_4, %c0_5], %8 {strides = array<i32>} : memref<2x8x32xf32, #tpu.memory_space<vmem>>, vector<2x8x32xf32>,
    %cst_6 = arith.constant 5.65685415 : f32
    %10 = vector.broadcast %cst_6 : f32 to vector<16x32xf32>
    %11 = arith.mulf %7, %10 : vector<16x32xf32>
    %c0_7 = arith.constant 0 : index
    %c0_8 = arith.constant 0 : index
    %12 = vector.load %arg3[%c0_7, %c0_8] : memref<8x32xf32, #tpu.memory_space<vmem>>, vector<8x32xf32>
    %13 = tpu.concatenate %12, %12 in 0 : vector<8x32xf32>, vector<8x32xf32> -> vector<16x32xf32>
    %14 = arith.addf %11, %13 : vector<16x32xf32>
    %c0_9 = arith.constant 0 : index
    %c0_10 = arith.constant 0 : index
    %15 = vector.load %arg1[%c0_9, %c0_10] : memref<2x8xi32, #tpu.memory_space<vmem>>, vector<2x8xi32>
    %c0_i32 = arith.constant 0 : i32
    %16 = vector.broadcast %c0_i32 : i32 to vector<2x8xi32>
    %17 = arith.cmpi eq, %15, %16 : vector<2x8xi32>
    %cst_11 = arith.constant -1.000000e+09 : f32
    %cst_12 = arith.constant 0.000000e+00 : f32
    %18 = vector.broadcast %cst_11 : f32 to vector<2x8xf32>
    %19 = vector.broadcast %cst_12 : f32 to vector<2x8xf32>
    %20 = arith.select %17, %18, %19 : vector<2x8xi1>, vector<2x8xf32>
    %21 = vector.shape_cast %20 : vector<2x8xf32> to vector<2x1x8xf32>
    %c0_13 = arith.constant 0 : index
    %c0_14 = arith.constant 0 : index
    %c0_15 = arith.constant 0 : index
    %22 = vector.load %arg4[%c0_13, %c0_14, %c0_15] : memref<2x32x96xf32, #tpu.memory_space<vmem>>, vector<1x32x96xf32>
    %23 = vector.shape_cast %22 : vector<1x32x96xf32> to vector<32x96xf32>
    %c0_16 = arith.constant 0 : index
    %c0_17 = arith.constant 0 : index
    %c0_18 = arith.constant 0 : index
    %24 = vector.load %arg5[%c0_16, %c0_17, %c0_18] : memref<2x32x32xf32, #tpu.memory_space<vmem>>, vector<1x32x32xf32>
    %25 = vector.shape_cast %24 : vector<1x32x32xf32> to vector<32x32xf32>
    %c0_19 = arith.constant 0 : index
    %c0_20 = arith.constant 0 : index
    %c0_21 = arith.constant 0 : index
    %26 = vector.load %arg6[%c0_19, %c0_20, %c0_21] : memref<2x32x64xf32, #tpu.memory_space<vmem>>, vector<1x32x64xf32>
    %27 = vector.shape_cast %26 : vector<1x32x64xf32> to vector<32x64xf32>
    %c0_22 = arith.constant 0 : index
    %c0_23 = arith.constant 0 : index
    %c0_24 = arith.constant 0 : index
    %28 = vector.load %arg7[%c0_22, %c0_23, %c0_24] : memref<2x64x32xf32, #tpu.memory_space<vmem>>, vector<1x64x32xf32>
    %29 = vector.shape_cast %28 : vector<1x64x32xf32> to vector<64x32xf32>
    %c0_25 = arith.constant 0 : index
    %c0_26 = arith.constant 0 : index
    %c0_27 = arith.constant 0 : index
    %30 = vector.load %arg8[%c0_25, %c0_26, %c0_27] : memref<2x9x32xf32, #tpu.memory_space<vmem>>, vector<1x9x32xf32>
    %31 = vector.shape_cast %30 : vector<1x9x32xf32> to vector<9x32xf32>
    %c0_28 = arith.constant 0 : index
    %c0_29 = arith.constant 0 : index
    %c0_30 = arith.constant 0 : index
    %32 = vector.load %arg9[%c0_28, %c0_29, %c0_30] : memref<2x1x64xf32, #tpu.memory_space<vmem>>, vector<1x1x64xf32>
    %33 = vector.shape_cast %32 : vector<1x1x64xf32> to vector<1x64xf32>
    %34 = vector.extract_strided_slice %31 {offsets = [0, 0], sizes = [1, 32], strides = [1, 1]} : vector<9x32xf32> to vector<1x32xf32>
    %35 = vector.extract_strided_slice %31 {offsets = [1, 0], sizes = [1, 32], strides = [1, 1]} : vector<9x32xf32> to vector<1x32xf32>
    %36 = vector.extract_strided_slice %31 {offsets = [2, 0], sizes = [1, 32], strides = [1, 1]} : vector<9x32xf32> to vector<1x32xf32>
    %37 = vector.extract_strided_slice %31 {offsets = [3, 0], sizes = [1, 32], strides = [1, 1]} : vector<9x32xf32> to vector<1x32xf32>
    %38 = vector.extract_strided_slice %31 {offsets = [4, 0], sizes = [1, 32], strides = [1, 1]} : vector<9x32xf32> to vector<1x32xf32>
    %39 = vector.extract_strided_slice %31 {offsets = [5, 0], sizes = [1, 32], strides = [1, 1]} : vector<9x32xf32> to vector<1x32xf32>
    %40 = vector.extract_strided_slice %31 {offsets = [6, 0], sizes = [1, 32], strides = [1, 1]} : vector<9x32xf32> to vector<1x32xf32>
    %41 = vector.extract_strided_slice %31 {offsets = [7, 0], sizes = [1, 32], strides = [1, 1]} : vector<9x32xf32> to vector<1x32xf32>
    %42 = vector.extract_strided_slice %31 {offsets = [8, 0], sizes = [1, 32], strides = [1, 1]} : vector<9x32xf32> to vector<1x32xf32>
    %cst_31 = arith.constant dense<0.000000e+00> : vector<16xf32>
    %43 = vector.multi_reduction <add>, %14, %cst_31 [1] : vector<16x32xf32> to vector<16xf32>
    %44 = vector.shape_cast %43 : vector<16xf32> to vector<16x1xf32>
    %cst_32 = arith.constant 3.200000e+01 : f32
    %45 = vector.broadcast %cst_32 : f32 to vector<16x1xf32>
    %46 = arith.divf %44, %45 : vector<16x1xf32>
    %47 = arith.mulf %14, %14 : vector<16x32xf32>
    %cst_33 = arith.constant dense<0.000000e+00> : vector<16xf32>
    %48 = vector.multi_reduction <add>, %47, %cst_33 [1] : vector<16x32xf32> to vector<16xf32>
    %49 = vector.shape_cast %48 : vector<16xf32> to vector<16x1xf32>
    %cst_34 = arith.constant 3.200000e+01 : f32
    %50 = vector.broadcast %cst_34 : f32 to vector<16x1xf32>
    %51 = arith.divf %49, %50 : vector<16x1xf32>
    %52 = arith.mulf %46, %46 : vector<16x1xf32>
    %53 = arith.subf %51, %52 : vector<16x1xf32>
    %54 = vector.broadcast %46 : vector<16x1xf32> to vector<16x32xf32>
    %55 = arith.subf %14, %54 : vector<16x32xf32>
    %cst_35 = arith.constant 9.99999974E-6 : f32
    %56 = vector.broadcast %cst_35 : f32 to vector<16x1xf32>
    %57 = arith.addf %53, %56 : vector<16x1xf32>
    %58 = math.rsqrt %57 : vector<16x1xf32>
    %59 = vector.broadcast %58 : vector<16x1xf32> to vector<16x32xf32>
    %60 = arith.mulf %55, %59 : vector<16x32xf32>
    %61 = vector.broadcast %34 : vector<1x32xf32> to vector<16x32xf32>
    %62 = arith.mulf %60, %61 : vector<16x32xf32>
    %63 = vector.broadcast %35 : vector<1x32xf32> to vector<16x32xf32>
    %64 = arith.addf %62, %63 : vector<16x32xf32>
    %cst_36 = arith.constant dense<0.000000e+00> : vector<16x96xf32>
    %65 = tpu.matmul %64, %23, %cst_36 {dimension_numbers = #tpu.dot_dimension_numbers<[1], [0], [0], [1], [0, 0, 1, 1], [], []>} : vector<16x32xf32>, vector<32x96xf32>, vector<16x96xf32> -> vector<16x96xf32>
    %66 = vector.extract_strided_slice %65 {offsets = [0, 0], sizes = [16, 32], strides = [1, 1]} : vector<16x96xf32> to vector<16x32xf32>
    %67 = vector.broadcast %36 : vector<1x32xf32> to vector<16x32xf32>
    %68 = arith.addf %66, %67 : vector<16x32xf32>
    %69 = vector.shape_cast %68 : vector<16x32xf32> to vector<2x8x32xf32>
    %70 = vector.extract_strided_slice %65 {offsets = [0, 32], sizes = [16, 32], strides = [1, 1]} : vector<16x96xf32> to vector<16x32xf32>
    %71 = vector.broadcast %37 : vector<1x32xf32> to vector<16x32xf32>
    %72 = arith.addf %70, %71 : vector<16x32xf32>
    %73 = vector.shape_cast %72 : vector<16x32xf32> to vector<2x8x32xf32>
    %74 = vector.extract_strided_slice %65 {offsets = [0, 64], sizes = [16, 32], strides = [1, 1]} : vector<16x96xf32> to vector<16x32xf32>
    %75 = vector.broadcast %38 : vector<1x32xf32> to vector<16x32xf32>
    %76 = arith.addf %74, %75 : vector<16x32xf32>
    %77 = vector.shape_cast %76 : vector<16x32xf32> to vector<2x8x32xf32>
    "tpu.trace_start"() <{level = 10 : i32, message = "bqd,bkd->bqk"}> : () -> ()
    %cst_37 = arith.constant dense<0.000000e+00> : vector<2x8x8xf32>
    %78 = tpu.matmul %69, %73, %cst_37 {dimension_numbers = #tpu.dot_dimension_numbers<[2], [2], [1], [1], [0, 0, 0, 1, 1, 1], [0], [0]>} : vector<2x8x32xf32>, vector<2x8x32xf32>, vector<2x8x8xf32> -> vector<2x8x8xf32>
    "tpu.trace_stop"() : () -> ()
    %cst_38 = arith.constant 0.176776692 : f32
    %79 = vector.broadcast %cst_38 : f32 to vector<2x8x8xf32>
    %80 = arith.mulf %78, %79 : vector<2x8x8xf32>
    %81 = vector.broadcast %21 : vector<2x1x8xf32> to vector<2x8x8xf32>
    %82 = arith.addf %80, %81 : vector<2x8x8xf32>
    %cst_39 = arith.constant dense<0xFF800000> : vector<2x8xf32>
    %83 = vector.multi_reduction <maximumf>, %82, %cst_39 [2] : vector<2x8x8xf32> to vector<2x8xf32>
    %84 = vector.shape_cast %83 : vector<2x8xf32> to vector<2x8x1xf32>
    %85 = vector.broadcast %84 : vector<2x8x1xf32> to vector<2x8x8xf32>
    %86 = arith.subf %82, %85 : vector<2x8x8xf32>
    %87 = math.exp %86 : vector<2x8x8xf32>
    %cst_40 = arith.constant dense<0.000000e+00> : vector<2x8xf32>
    %88 = vector.multi_reduction <add>, %87, %cst_40 [2] : vector<2x8x8xf32> to vector<2x8xf32>
    %89 = vector.shape_cast %88 : vector<2x8xf32> to vector<2x8x1xf32>
    %90 = tpu.reciprocal %89 {approx = true} : vector<2x8x1xf32> -> vector<2x8x1xf32>
    %91 = vector.broadcast %90 : vector<2x8x1xf32> to vector<2x8x8xf32>
    %92 = arith.mulf %87, %91 : vector<2x8x8xf32>
    %c0_41 = arith.constant 0 : index
    %c0_42 = arith.constant 0 : index
    %c0_43 = arith.constant 0 : index
    %c0_44 = arith.constant 0 : index
    %93 = vector.load %arg14[%c0_41, %c0_42, %c0_43, %c0_44] : memref<2x2x8x8xf32, #tpu.memory_space<vmem>>, vector<1x2x8x8xf32>
    %94 = vector.shape_cast %93 : vector<1x2x8x8xf32> to vector<2x8x8xf32>
    %95 = vector.shape_cast %92 : vector<2x8x8xf32> to vector<1x2x8x8xf32>
    tpu.vector_store %arg14[%c0_41, %c0_42, %c0_43, %c0_44], %95 {strides = array<i32>} : memref<2x2x8x8xf32, #tpu.memory_space<vmem>>, vector<1x2x8x8xf32>,
    "tpu.trace_start"() <{level = 10 : i32, message = "bqk,bkd->bqd"}> : () -> ()
    %cst_45 = arith.constant dense<0.000000e+00> : vector<2x8x32xf32>
    %96 = tpu.matmul %92, %77, %cst_45 {dimension_numbers = #tpu.dot_dimension_numbers<[2], [1], [1], [2], [0, 0, 0, 1, 1, 2], [0], [0]>} : vector<2x8x8xf32>, vector<2x8x32xf32>, vector<2x8x32xf32> -> vector<2x8x32xf32>
    "tpu.trace_stop"() : () -> ()
    %97 = vector.shape_cast %96 : vector<2x8x32xf32> to vector<16x32xf32>
    %cst_46 = arith.constant dense<0.000000e+00> : vector<16x32xf32>
    %98 = tpu.matmul %97, %25, %cst_46 {dimension_numbers = #tpu.dot_dimension_numbers<[1], [0], [0], [1], [0, 0, 1, 1], [], []>} : vector<16x32xf32>, vector<32x32xf32>, vector<16x32xf32> -> vector<16x32xf32>
    %99 = arith.addf %14, %98 : vector<16x32xf32>
    %100 = vector.broadcast %39 : vector<1x32xf32> to vector<16x32xf32>
    %101 = arith.addf %99, %100 : vector<16x32xf32>
    %cst_47 = arith.constant dense<0.000000e+00> : vector<16xf32>
    %102 = vector.multi_reduction <add>, %101, %cst_47 [1] : vector<16x32xf32> to vector<16xf32>
    %103 = vector.shape_cast %102 : vector<16xf32> to vector<16x1xf32>
    %cst_48 = arith.constant 3.200000e+01 : f32
    %104 = vector.broadcast %cst_48 : f32 to vector<16x1xf32>
    %105 = arith.divf %103, %104 : vector<16x1xf32>
    %106 = arith.mulf %101, %101 : vector<16x32xf32>
    %cst_49 = arith.constant dense<0.000000e+00> : vector<16xf32>
    %107 = vector.multi_reduction <add>, %106, %cst_49 [1] : vector<16x32xf32> to vector<16xf32>
    %108 = vector.shape_cast %107 : vector<16xf32> to vector<16x1xf32>
    %cst_50 = arith.constant 3.200000e+01 : f32
    %109 = vector.broadcast %cst_50 : f32 to vector<16x1xf32>
    %110 = arith.divf %108, %109 : vector<16x1xf32>
    %111 = arith.mulf %105, %105 : vector<16x1xf32>
    %112 = arith.subf %110, %111 : vector<16x1xf32>
    %113 = vector.broadcast %105 : vector<16x1xf32> to vector<16x32xf32>
    %114 = arith.subf %101, %113 : vector<16x32xf32>
    %cst_51 = arith.constant 9.99999974E-6 : f32
    %115 = vector.broadcast %cst_51 : f32 to vector<16x1xf32>
    %116 = arith.addf %112, %115 : vector<16x1xf32>
    %117 = math.rsqrt %116 : vector<16x1xf32>
    %118 = vector.broadcast %117 : vector<16x1xf32> to vector<16x32xf32>
    %119 = arith.mulf %114, %118 : vector<16x32xf32>
    %120 = vector.broadcast %40 : vector<1x32xf32> to vector<16x32xf32>
    %121 = arith.mulf %119, %120 : vector<16x32xf32>
    %122 = vector.broadcast %41 : vector<1x32xf32> to vector<16x32xf32>
    %123 = arith.addf %121, %122 : vector<16x32xf32>
    %cst_52 = arith.constant dense<0.000000e+00> : vector<16x64xf32>
    %124 = tpu.matmul %123, %27, %cst_52 {dimension_numbers = #tpu.dot_dimension_numbers<[1], [0], [0], [1], [0, 0, 1, 1], [], []>} : vector<16x32xf32>, vector<32x64xf32>, vector<16x64xf32> -> vector<16x64xf32>
    %125 = vector.broadcast %33 : vector<1x64xf32> to vector<16x64xf32>
    %126 = arith.addf %124, %125 : vector<16x64xf32>
    %cst_53 = arith.constant 0.000000e+00 : f32
    %127 = vector.broadcast %cst_53 : f32 to vector<16x64xf32>
    %128 = arith.maximumf %126, %127 : vector<16x64xf32>
    %cst_54 = arith.constant dense<0.000000e+00> : vector<16x32xf32>
    %129 = tpu.matmul %128, %29, %cst_54 {dimension_numbers = #tpu.dot_dimension_numbers<[1], [0], [0], [1], [0, 0, 1, 1], [], []>} : vector<16x64xf32>, vector<64x32xf32>, vector<16x32xf32> -> vector<16x32xf32>
    %130 = arith.addf %101, %129 : vector<16x32xf32>
    %131 = vector.broadcast %42 : vector<1x32xf32> to vector<16x32xf32>
    %132 = arith.addf %130, %131 : vector<16x32xf32>
    %c1 = arith.constant 1 : index
    %c0_55 = arith.constant 0 : index
    %c0_56 = arith.constant 0 : index
    %133 = vector.load %arg4[%c1, %c0_55, %c0_56] : memref<2x32x96xf32, #tpu.memory_space<vmem>>, vector<1x32x96xf32>
    %134 = vector.shape_cast %133 : vector<1x32x96xf32> to vector<32x96xf32>
    %c1_57 = arith.constant 1 : index
    %c0_58 = arith.constant 0 : index
    %c0_59 = arith.constant 0 : index
    %135 = vector.load %arg5[%c1_57, %c0_58, %c0_59] : memref<2x32x32xf32, #tpu.memory_space<vmem>>, vector<1x32x32xf32>
    %136 = vector.shape_cast %135 : vector<1x32x32xf32> to vector<32x32xf32>
    %c1_60 = arith.constant 1 : index
    %c0_61 = arith.constant 0 : index
    %c0_62 = arith.constant 0 : index
    %137 = vector.load %arg6[%c1_60, %c0_61, %c0_62] : memref<2x32x64xf32, #tpu.memory_space<vmem>>, vector<1x32x64xf32>
    %138 = vector.shape_cast %137 : vector<1x32x64xf32> to vector<32x64xf32>
    %c1_63 = arith.constant 1 : index
    %c0_64 = arith.constant 0 : index
    %c0_65 = arith.constant 0 : index
    %139 = vector.load %arg7[%c1_63, %c0_64, %c0_65] : memref<2x64x32xf32, #tpu.memory_space<vmem>>, vector<1x64x32xf32>
    %140 = vector.shape_cast %139 : vector<1x64x32xf32> to vector<64x32xf32>
    %c1_66 = arith.constant 1 : index
    %c0_67 = arith.constant 0 : index
    %c0_68 = arith.constant 0 : index
    %141 = vector.load %arg8[%c1_66, %c0_67, %c0_68] : memref<2x9x32xf32, #tpu.memory_space<vmem>>, vector<1x9x32xf32>
    %142 = vector.shape_cast %141 : vector<1x9x32xf32> to vector<9x32xf32>
    %c1_69 = arith.constant 1 : index
    %c0_70 = arith.constant 0 : index
    %c0_71 = arith.constant 0 : index
    %143 = vector.load %arg9[%c1_69, %c0_70, %c0_71] : memref<2x1x64xf32, #tpu.memory_space<vmem>>, vector<1x1x64xf32>
    %144 = vector.shape_cast %143 : vector<1x1x64xf32> to vector<1x64xf32>
    %145 = vector.extract_strided_slice %142 {offsets = [0, 0], sizes = [1, 32], strides = [1, 1]} : vector<9x32xf32> to vector<1x32xf32>
    %146 = vector.extract_strided_slice %142 {offsets = [1, 0], sizes = [1, 32], strides = [1, 1]} : vector<9x32xf32> to vector<1x32xf32>
    %147 = vector.extract_strided_slice %142 {offsets = [2, 0], sizes = [1, 32], strides = [1, 1]} : vector<9x32xf32> to vector<1x32xf32>
    %148 = vector.extract_strided_slice %142 {offsets = [3, 0], sizes = [1, 32], strides = [1, 1]} : vector<9x32xf32> to vector<1x32xf32>
    %149 = vector.extract_strided_slice %142 {offsets = [4, 0], sizes = [1, 32], strides = [1, 1]} : vector<9x32xf32> to vector<1x32xf32>
    %150 = vector.extract_strided_slice %142 {offsets = [5, 0], sizes = [1, 32], strides = [1, 1]} : vector<9x32xf32> to vector<1x32xf32>
    %151 = vector.extract_strided_slice %142 {offsets = [6, 0], sizes = [1, 32], strides = [1, 1]} : vector<9x32xf32> to vector<1x32xf32>
    %152 = vector.extract_strided_slice %142 {offsets = [7, 0], sizes = [1, 32], strides = [1, 1]} : vector<9x32xf32> to vector<1x32xf32>
    %153 = vector.extract_strided_slice %142 {offsets = [8, 0], sizes = [1, 32], strides = [1, 1]} : vector<9x32xf32> to vector<1x32xf32>
    %cst_72 = arith.constant dense<0.000000e+00> : vector<16xf32>
    %154 = vector.multi_reduction <add>, %132, %cst_72 [1] : vector<16x32xf32> to vector<16xf32>
    %155 = vector.shape_cast %154 : vector<16xf32> to vector<16x1xf32>
    %cst_73 = arith.constant 3.200000e+01 : f32
    %156 = vector.broadcast %cst_73 : f32 to vector<16x1xf32>
    %157 = arith.divf %155, %156 : vector<16x1xf32>
    %158 = arith.mulf %132, %132 : vector<16x32xf32>
    %cst_74 = arith.constant dense<0.000000e+00> : vector<16xf32>
    %159 = vector.multi_reduction <add>, %158, %cst_74 [1] : vector<16x32xf32> to vector<16xf32>
    %160 = vector.shape_cast %159 : vector<16xf32> to vector<16x1xf32>
    %cst_75 = arith.constant 3.200000e+01 : f32
    %161 = vector.broadcast %cst_75 : f32 to vector<16x1xf32>
    %162 = arith.divf %160, %161 : vector<16x1xf32>
    %163 = arith.mulf %157, %157 : vector<16x1xf32>
    %164 = arith.subf %162, %163 : vector<16x1xf32>
    %165 = vector.broadcast %157 : vector<16x1xf32> to vector<16x32xf32>
    %166 = arith.subf %132, %165 : vector<16x32xf32>
    %cst_76 = arith.constant 9.99999974E-6 : f32
    %167 = vector.broadcast %cst_76 : f32 to vector<16x1xf32>
    %168 = arith.addf %164, %167 : vector<16x1xf32>
    %169 = math.rsqrt %168 : vector<16x1xf32>
    %170 = vector.broadcast %169 : vector<16x1xf32> to vector<16x32xf32>
    %171 = arith.mulf %166, %170 : vector<16x32xf32>
    %172 = vector.broadcast %145 : vector<1x32xf32> to vector<16x32xf32>
    %173 = arith.mulf %171, %172 : vector<16x32xf32>
    %174 = vector.broadcast %146 : vector<1x32xf32> to vector<16x32xf32>
    %175 = arith.addf %173, %174 : vector<16x32xf32>
    %cst_77 = arith.constant dense<0.000000e+00> : vector<16x96xf32>
    %176 = tpu.matmul %175, %134, %cst_77 {dimension_numbers = #tpu.dot_dimension_numbers<[1], [0], [0], [1], [0, 0, 1, 1], [], []>} : vector<16x32xf32>, vector<32x96xf32>, vector<16x96xf32> -> vector<16x96xf32>
    %177 = vector.extract_strided_slice %176 {offsets = [0, 0], sizes = [16, 32], strides = [1, 1]} : vector<16x96xf32> to vector<16x32xf32>
    %178 = vector.broadcast %147 : vector<1x32xf32> to vector<16x32xf32>
    %179 = arith.addf %177, %178 : vector<16x32xf32>
    %180 = vector.shape_cast %179 : vector<16x32xf32> to vector<2x8x32xf32>
    %181 = vector.extract_strided_slice %176 {offsets = [0, 32], sizes = [16, 32], strides = [1, 1]} : vector<16x96xf32> to vector<16x32xf32>
    %182 = vector.broadcast %148 : vector<1x32xf32> to vector<16x32xf32>
    %183 = arith.addf %181, %182 : vector<16x32xf32>
    %184 = vector.shape_cast %183 : vector<16x32xf32> to vector<2x8x32xf32>
    %185 = vector.extract_strided_slice %176 {offsets = [0, 64], sizes = [16, 32], strides = [1, 1]} : vector<16x96xf32> to vector<16x32xf32>
    %186 = vector.broadcast %149 : vector<1x32xf32> to vector<16x32xf32>
    %187 = arith.addf %185, %186 : vector<16x32xf32>
    %188 = vector.shape_cast %187 : vector<16x32xf32> to vector<2x8x32xf32>
    "tpu.trace_start"() <{level = 10 : i32, message = "bqd,bkd->bqk"}> : () -> ()
    %cst_78 = arith.constant dense<0.000000e+00> : vector<2x8x8xf32>
    %189 = tpu.matmul %180, %184, %cst_78 {dimension_numbers = #tpu.dot_dimension_numbers<[2], [2], [1], [1], [0, 0, 0, 1, 1, 1], [0], [0]>} : vector<2x8x32xf32>, vector<2x8x32xf32>, vector<2x8x8xf32> -> vector<2x8x8xf32>
    "tpu.trace_stop"() : () -> ()
    %cst_79 = arith.constant 0.176776692 : f32
    %190 = vector.broadcast %cst_79 : f32 to vector<2x8x8xf32>
    %191 = arith.mulf %189, %190 : vector<2x8x8xf32>
    %192 = vector.broadcast %21 : vector<2x1x8xf32> to vector<2x8x8xf32>
    %193 = arith.addf %191, %192 : vector<2x8x8xf32>
    %cst_80 = arith.constant dense<0xFF800000> : vector<2x8xf32>
    %194 = vector.multi_reduction <maximumf>, %193, %cst_80 [2] : vector<2x8x8xf32> to vector<2x8xf32>
    %195 = vector.shape_cast %194 : vector<2x8xf32> to vector<2x8x1xf32>
    %196 = vector.broadcast %195 : vector<2x8x1xf32> to vector<2x8x8xf32>
    %197 = arith.subf %193, %196 : vector<2x8x8xf32>
    %198 = math.exp %197 : vector<2x8x8xf32>
    %cst_81 = arith.constant dense<0.000000e+00> : vector<2x8xf32>
    %199 = vector.multi_reduction <add>, %198, %cst_81 [2] : vector<2x8x8xf32> to vector<2x8xf32>
    %200 = vector.shape_cast %199 : vector<2x8xf32> to vector<2x8x1xf32>
    %201 = tpu.reciprocal %200 {approx = true} : vector<2x8x1xf32> -> vector<2x8x1xf32>
    %202 = vector.broadcast %201 : vector<2x8x1xf32> to vector<2x8x8xf32>
    %203 = arith.mulf %198, %202 : vector<2x8x8xf32>
    %c1_82 = arith.constant 1 : index
    %c0_83 = arith.constant 0 : index
    %c0_84 = arith.constant 0 : index
    %c0_85 = arith.constant 0 : index
    %204 = vector.load %arg14[%c1_82, %c0_83, %c0_84, %c0_85] : memref<2x2x8x8xf32, #tpu.memory_space<vmem>>, vector<1x2x8x8xf32>
    %205 = vector.shape_cast %204 : vector<1x2x8x8xf32> to vector<2x8x8xf32>
    %206 = vector.shape_cast %203 : vector<2x8x8xf32> to vector<1x2x8x8xf32>
    tpu.vector_store %arg14[%c1_82, %c0_83, %c0_84, %c0_85], %206 {strides = array<i32>} : memref<2x2x8x8xf32, #tpu.memory_space<vmem>>, vector<1x2x8x8xf32>,
    "tpu.trace_start"() <{level = 10 : i32, message = "bqk,bkd->bqd"}> : () -> ()
    %cst_86 = arith.constant dense<0.000000e+00> : vector<2x8x32xf32>
    %207 = tpu.matmul %203, %188, %cst_86 {dimension_numbers = #tpu.dot_dimension_numbers<[2], [1], [1], [2], [0, 0, 0, 1, 1, 2], [0], [0]>} : vector<2x8x8xf32>, vector<2x8x32xf32>, vector<2x8x32xf32> -> vector<2x8x32xf32>
    "tpu.trace_stop"() : () -> ()
    %208 = vector.shape_cast %207 : vector<2x8x32xf32> to vector<16x32xf32>
    %cst_87 = arith.constant dense<0.000000e+00> : vector<16x32xf32>
    %209 = tpu.matmul %208, %136, %cst_87 {dimension_numbers = #tpu.dot_dimension_numbers<[1], [0], [0], [1], [0, 0, 1, 1], [], []>} : vector<16x32xf32>, vector<32x32xf32>, vector<16x32xf32> -> vector<16x32xf32>
    %210 = arith.addf %132, %209 : vector<16x32xf32>
    %211 = vector.broadcast %150 : vector<1x32xf32> to vector<16x32xf32>
    %212 = arith.addf %210, %211 : vector<16x32xf32>
    %cst_88 = arith.constant dense<0.000000e+00> : vector<16xf32>
    %213 = vector.multi_reduction <add>, %212, %cst_88 [1] : vector<16x32xf32> to vector<16xf32>
    %214 = vector.shape_cast %213 : vector<16xf32> to vector<16x1xf32>
    %cst_89 = arith.constant 3.200000e+01 : f32
    %215 = vector.broadcast %cst_89 : f32 to vector<16x1xf32>
    %216 = arith.divf %214, %215 : vector<16x1xf32>
    %217 = arith.mulf %212, %212 : vector<16x32xf32>
    %cst_90 = arith.constant dense<0.000000e+00> : vector<16xf32>
    %218 = vector.multi_reduction <add>, %217, %cst_90 [1] : vector<16x32xf32> to vector<16xf32>
    %219 = vector.shape_cast %218 : vector<16xf32> to vector<16x1xf32>
    %cst_91 = arith.constant 3.200000e+01 : f32
    %220 = vector.broadcast %cst_91 : f32 to vector<16x1xf32>
    %221 = arith.divf %219, %220 : vector<16x1xf32>
    %222 = arith.mulf %216, %216 : vector<16x1xf32>
    %223 = arith.subf %221, %222 : vector<16x1xf32>
    %224 = vector.broadcast %216 : vector<16x1xf32> to vector<16x32xf32>
    %225 = arith.subf %212, %224 : vector<16x32xf32>
    %cst_92 = arith.constant 9.99999974E-6 : f32
    %226 = vector.broadcast %cst_92 : f32 to vector<16x1xf32>
    %227 = arith.addf %223, %226 : vector<16x1xf32>
    %228 = math.rsqrt %227 : vector<16x1xf32>
    %229 = vector.broadcast %228 : vector<16x1xf32> to vector<16x32xf32>
    %230 = arith.mulf %225, %229 : vector<16x32xf32>
    %231 = vector.broadcast %151 : vector<1x32xf32> to vector<16x32xf32>
    %232 = arith.mulf %230, %231 : vector<16x32xf32>
    %233 = vector.broadcast %152 : vector<1x32xf32> to vector<16x32xf32>
    %234 = arith.addf %232, %233 : vector<16x32xf32>
    %cst_93 = arith.constant dense<0.000000e+00> : vector<16x64xf32>
    %235 = tpu.matmul %234, %138, %cst_93 {dimension_numbers = #tpu.dot_dimension_numbers<[1], [0], [0], [1], [0, 0, 1, 1], [], []>} : vector<16x32xf32>, vector<32x64xf32>, vector<16x64xf32> -> vector<16x64xf32>
    %236 = vector.broadcast %144 : vector<1x64xf32> to vector<16x64xf32>
    %237 = arith.addf %235, %236 : vector<16x64xf32>
    %cst_94 = arith.constant 0.000000e+00 : f32
    %238 = vector.broadcast %cst_94 : f32 to vector<16x64xf32>
    %239 = arith.maximumf %237, %238 : vector<16x64xf32>
    %cst_95 = arith.constant dense<0.000000e+00> : vector<16x32xf32>
    %240 = tpu.matmul %239, %140, %cst_95 {dimension_numbers = #tpu.dot_dimension_numbers<[1], [0], [0], [1], [0, 0, 1, 1], [], []>} : vector<16x64xf32>, vector<64x32xf32>, vector<16x32xf32> -> vector<16x32xf32>
    %241 = arith.addf %212, %240 : vector<16x32xf32>
    %242 = vector.broadcast %153 : vector<1x32xf32> to vector<16x32xf32>
    %243 = arith.addf %241, %242 : vector<16x32xf32>
    %244 = vector.shape_cast %243 : vector<16x32xf32> to vector<2x8x32xf32>
    %245 = vector.extract_strided_slice %244 {offsets = [0, 0, 0], sizes = [2, 1, 32], strides = [1, 1, 1]} : vector<2x8x32xf32> to vector<2x1x32xf32>
    %246 = vector.shape_cast %245 : vector<2x1x32xf32> to vector<2x32xf32>
    %c0_96 = arith.constant 0 : index
    %c0_97 = arith.constant 0 : index
    %247 = vector.load %arg10[%c0_96, %c0_97] : memref<32x3xf32, #tpu.memory_space<vmem>>, vector<32x3xf32>
    %cst_98 = arith.constant dense<0.000000e+00> : vector<2x3xf32>
    %248 = tpu.matmul %246, %247, %cst_98 {dimension_numbers = #tpu.dot_dimension_numbers<[1], [0], [0], [1], [0, 0, 1, 1], [], []>} : vector<2x32xf32>, vector<32x3xf32>, vector<2x3xf32> -> vector<2x3xf32>
    %c0_99 = arith.constant 0 : index
    %c0_100 = arith.constant 0 : index
    %249 = vector.load %arg11[%c0_99, %c0_100] : memref<1x3xf32, #tpu.memory_space<vmem>>, vector<1x3xf32>
    %250 = vector.broadcast %249 : vector<1x3xf32> to vector<2x3xf32>
    %251 = arith.addf %248, %250 : vector<2x3xf32>
    %c0_101 = arith.constant 0 : index
    %c0_102 = arith.constant 0 : index
    %252 = vector.load %arg13[%c0_101, %c0_102] : memref<2x3xf32, #tpu.memory_space<vmem>>, vector<2x3xf32>
    tpu.vector_store %arg13[%c0_101, %c0_102], %251 {strides = array<i32>} : memref<2x3xf32, #tpu.memory_space<vmem>>, vector<2x3xf32>,
    return
  }
}

</mosaic_0001>

<llo_original>
// kernel: transformer_forward.1
$region0: #{transformer_forward.1}
  #allocation0 [shape = 'u32[]', space=smem, size = 0x4, offset = 0x4, fixed_abs, tag = 'smem constant byte address 0x4 - core index']
  #allocation1 [shape = 'u32[144,128]{1,0:T(1,128)}', space=vmem, size = 0x12000, scoped, tag = 'internal scratch']
  %s0 = inlined_call_operand.vmem [shape: s32[16,1], index: 0, kind: input, shape index: {}]
  %s1 = inlined_call_operand.vmem [shape: s32[2,8], index: 1, kind: input, shape index: {}]
  %s2 = inlined_call_operand.vmem [shape: f32[50,32], index: 2, kind: input, shape index: {}]
  %s3 = inlined_call_operand.vmem [shape: f32[8,32], index: 3, kind: input, shape index: {}]
  %s4 = inlined_call_operand.vmem [shape: f32[2,32,96], index: 4, kind: input, shape index: {}]
  %s5 = inlined_call_operand.vmem [shape: f32[2,32,32], index: 5, kind: input, shape index: {}]
  %s6 = inlined_call_operand.vmem [shape: f32[2,32,64], index: 6, kind: input, shape index: {}]
  %s7 = inlined_call_operand.vmem [shape: f32[2,64,32], index: 7, kind: input, shape index: {}]
  %s8 = inlined_call_operand.vmem [shape: f32[2,9,32], index: 8, kind: input, shape index: {}]
  %s9 = inlined_call_operand.vmem [shape: f32[2,1,64], index: 9, kind: input, shape index: {}]
  %s10 = inlined_call_operand.vmem [shape: f32[32,3], index: 10, kind: input, shape index: {}]
  %s11 = inlined_call_operand.vmem [shape: f32[1,3], index: 11, kind: input, shape index: {}]
  %s12 = inlined_call_operand.hbm [shape: f32[2,8,32], index: 12, kind: output, shape index: {0}]
  %s13 = inlined_call_operand.hbm [shape: f32[2,3], index: 13, kind: output, shape index: {1}]
  %s14 = inlined_call_operand.vmem [shape: f32[2,2,8,8], index: 14, kind: output, shape index: {2}]
  %15 = xla_tuple %s12, %s13, %s14
  %s16 = sld [smem:[#allocation0]]
  $region74: #{transformer_forward.1} parent=0
    _
  %s18 = ssub.s32 1, %s16
  %s19 = scalar_select 0, %s18, %s16
  $region1: #{transformer_forward.1} parent=0
    #allocation2 [shape = 'u8[8192]{0}', space=vmem, size = 0x2000, scoped, tag = 'output window, operand 0, single buffered']
    #allocation3 [shape = 's32[1]{0}', space=sflag, size = 0x4, scoped, tag = 'scoped memory for transformer_forward.1']
    #allocation4 [shape = 'u8[1024]{0}', space=vmem, size = 0x400, scoped, tag = 'output window, operand 1, single buffered']
    #allocation5 [shape = 's32[1]{0}', space=sflag, size = 0x4, scoped, tag = 'scoped memory for transformer_forward.1']
    %20 = vsyncpa [#allocation3], 0
    %21 = vsyncpa [#allocation5], 0
    // Predicated region
    $region2: #{transformer_forward.1} parent=1 // pred_check
      _
    $region3: #{transformer_forward.1} parent=1 // pred_check_branch
      %23 = sbr.rel (0) target = $region5
    $region4: #{transformer_forward.1} parent=1 // pred_region
      _
    $region5: #{transformer_forward.1} parent=1 // pred_fallthru
      _
    // Predicated region
    $region6: #{transformer_forward.1} parent=1 // pred_check
      _
    $region7: #{transformer_forward.1} parent=1 // pred_check_branch
      %25 = sbr.rel (0) target = $region9
    $region8: #{transformer_forward.1} parent=1 // pred_region
      _
    $region9: #{transformer_forward.1} parent=1 // pred_fallthru
      _
    // Predicated region
    $region10: #{transformer_forward.1} parent=1 // pred_check
      _
    $region11: #{transformer_forward.1} parent=1 // pred_check_branch
      %27 = sbr.rel (0) target = $region13
    $region12: #{transformer_forward.1} parent=1 // pred_region
      _
    $region13: #{transformer_forward.1} parent=1 // pred_fallthru
      _
    // Predicated region
    $region14: #{transformer_forward.1} parent=1 // pred_check
      _
    $region15: #{transformer_forward.1} parent=1 // pred_check_branch
      %29 = sbr.rel (0) target = $region17
    $region16: #{transformer_forward.1} parent=1 // pred_region
      _
    $region17: #{transformer_forward.1} parent=1 // pred_fallthru
      _
    // Predicated region
    $region18: #{transformer_forward.1} parent=1 // pred_check
      _
    $region19: #{transformer_forward.1} parent=1 // pred_check_branch
      %31 = sbr.rel (0) target = $region21
    $region20: #{transformer_forward.1} parent=1 // pred_region
      _
    $region21: #{transformer_forward.1} parent=1 // pred_fallthru
      _
    // Predicated region
    $region22: #{transformer_forward.1} parent=1 // pred_check
      _
    $region23: #{transformer_forward.1} parent=1 // pred_check_branch
      %33 = sbr.rel (0) target = $region25
    $region24: #{transformer_forward.1} parent=1 // pred_region
      _
    $region25: #{transformer_forward.1} parent=1 // pred_fallthru
      _
    // Predicated region
    $region26: #{transformer_forward.1} parent=1 // pred_check
      _
    $region27: #{transformer_forward.1} parent=1 // pred_check_branch
      %35 = sbr.rel (0) target = $region29
    $region28: #{transformer_forward.1} parent=1 // pred_region
      _
    $region29: #{transformer_forward.1} parent=1 // pred_fallthru
      _
    // Predicated region
    $region30: #{transformer_forward.1} parent=1 // pred_check
      _
    $region31: #{transformer_forward.1} parent=1 // pred_check_branch
      %37 = sbr.rel (0) target = $region33
    $region32: #{transformer_forward.1} parent=1 // pred_region
      _
    $region33: #{transformer_forward.1} parent=1 // pred_fallthru
      _
    // Predicated region
    $region34: #{transformer_forward.1} parent=1 // pred_check
      _
    $region35: #{transformer_forward.1} parent=1 // pred_check_branch
      %39 = sbr.rel (0) target = $region37
    $region36: #{transformer_forward.1} parent=1 // pred_region
      _
    $region37: #{transformer_forward.1} parent=1 // pred_fallthru
      _
    // Predicated region
    $region38: #{transformer_forward.1} parent=1 // pred_check
      _
    $region39: #{transformer_forward.1} parent=1 // pred_check_branch
      %41 = sbr.rel (0) target = $region41
    $region40: #{transformer_forward.1} parent=1 // pred_region
      _
    $region41: #{transformer_forward.1} parent=1 // pred_fallthru
      _
    // Predicated region
    $region42: #{transformer_forward.1} parent=1 // pred_check
      _
    $region43: #{transformer_forward.1} parent=1 // pred_check_branch
      %43 = sbr.rel (0) target = $region45
    $region44: #{transformer_forward.1} parent=1 // pred_region
      _
    $region45: #{transformer_forward.1} parent=1 // pred_fallthru
      _
    // Predicated region
    $region46: #{transformer_forward.1} parent=1 // pred_check
      _
    $region47: #{transformer_forward.1} parent=1 // pred_check_branch
      %45 = sbr.rel (0) target = $region49
    $region48: #{transformer_forward.1} parent=1 // pred_region
      _
    $region49: #{transformer_forward.1} parent=1 // pred_fallthru
      _
    %v46 = vld [vmem:[%s0] sm:$0xff]
    %v47 = vld [vmem:[%s0 + $0x8] sm:$0xff]
    %v48 = vlaneseq
    %v49 = vand.u32 %v48, 127
    %50 = vset.pattern.permute.xlu0 0
    %51 = vperm.xlu0 %50, %v46
    %v52 = vpop.permute.xlu0 %51
    %53 = vset.pattern.permute.xlu0 0
    %54 = vperm.xlu0 %53, %v47
    %v55 = vpop.permute.xlu0 %54
    %vm56 = vcmp.eq.s32.totalorder %v49, %v52
    %vm57 = vcmp.eq.s32.totalorder %v49, %v55
    %v58 = vsel %vm56, 1, 0
    %v59 = vsel %vm57, 1, 0
    %v60 = vcvt.s32.f32 %v58
    %v61 = vcvt.s32.f32 %v59
    %v62 = vld [vmem:[%s2] sm:$0xff]
    %v63 = vld [vmem:[%s2 + $0x8] sm:$0xff]
    %v64 = vld [vmem:[%s2 + $0x10] sm:$0xff]
    %v65 = vld [vmem:[%s2 + $0x18] sm:$0xff]
    %v66 = vld [vmem:[%s2 + $0x20] sm:$0xff]
    %v67 = vld [vmem:[%s2 + $0x28] sm:$0xff]
    %v68 = vld [vmem:[%s2 + $0x30] sm:$0x3]
    %vm69 = vcmask 408576
    %v71 = vsel %vm69, %v60, 0
    %v74 = vsel %vm69, %v61, 0
    %vm76 = vcmask 1041408
    %v78 = vsel %vm76, %v68, 0
    %80 = vmatprep.subr.mxu0 0.0
    %81 = vmatpush1.msra.mxu0 %v62
    %82 = vmatprep.subr.mxu0 0.0
    %83 = vmatpush1.msra.mxu0 %v63
    %84 = vmatprep.subr.mxu0 0.0
    %85 = vmatpush1.msra.mxu0 %v64
    %86 = vmatprep.subr.mxu0 0.0
    %87 = vmatpush1.msra.mxu0 %v65
    %88 = vmatprep.subr.mxu0 0.0
    %89 = vmatpush1.msra.mxu0 %v66
    %90 = vmatprep.subr.mxu0 0.0
    %91 = vmatpush1.msra.mxu0 %v67
    %92 = vmatprep.subr.mxu0 0.0
    %93 = vmatpush1.msra.mxu0 %v78
    %94 = vmatprep.subr.mxu0 0.0
    %95 = vmatpush1.msra.mxu0 0.0
    %96 = vmatprep.subr.mxu0 0.0
    %97 = vmatpush1.msra.mxu0 0.0
    %98 = vmatprep.subr.mxu0 0.0
    %99 = vmatpush1.msra.mxu0 0.0
    %100 = vmatprep.subr.mxu0 0.0
    %101 = vmatpush1.msra.mxu0 0.0
    %102 = vmatprep.subr.mxu0 0.0
    %103 = vmatpush1.msra.mxu0 0.0
    %104 = vmatprep.subr.mxu0 0.0
    %105 = vmatpush1.msra.mxu0 0.0
    %106 = vmatprep.subr.mxu0 0.0
    %107 = vmatpush1.msra.mxu0 0.0
    %108 = vmatprep.subr.mxu0 0.0
    %109 = vmatpush1.msra.mxu0 0.0
    %110 = vmatprep.subr.mxu0 0.0
    %111 = vmatpush1.msra.mxu0 0.0
    %112 = vmatprep.subr.mxu0 0.0
    %113 = vmatpush1.msra.mxu0 0.0
    %114 = vmatprep.subr.mxu0 0.0
    %115 = vmatpush1.msra.mxu0 0.0
    %116 = vmatprep.subr.mxu0 0.0
    %117 = vmatpush1.msra.mxu0 0.0
    %118 = vmatprep.subr.mxu0 0.0
    %119 = vmatpush1.msra.mxu0 0.0
    %120 = vmatprep.subr.mxu0 0.0
    %121 = vmatpush1.msra.mxu0 0.0
    %122 = vmatprep.subr.mxu0 0.0
    %123 = vmatpush1.msra.mxu0 0.0
    %124 = vmatprep.subr.mxu0 0.0
    %125 = vmatpush1.msra.mxu0 0.0
    %126 = vmatprep.subr.mxu0 0.0
    %127 = vmatpush1.msra.mxu0 0.0
    %128 = vmatprep.subr.mxu0 0.0
    %129 = vmatpush1.msra.mxu0 0.0
    %130 = vmatprep.subr.mxu0 0.0
    %131 = vmatpush1.msra.mxu0 0.0
    %132 = vmatprep.subr.mxu0 0.0
    %133 = vmatpush1.msra.mxu0 0.0
    %134 = vmatprep.subr.mxu0 0.0
    %135 = vmatpush1.msra.mxu0 0.0
    %136 = vmatprep.subr.mxu0 0.0
    %137 = vmatpush1.msra.mxu0 0.0
    %138 = vmatprep.subr.mxu0 0.0
    %139 = vmatpush1.msra.mxu0 0.0
    %140 = vmatprep.subr.mxu0 0.0
    %141 = vmatpush1.msra.mxu0 0.0
    %142 = vmatprep.subr.mxu0 0.0
    %143 = vmatpush1.msra.mxu0 0.0
    %144 = vmatprep.mubr.f32.mxu0 0.0
    %145 = vmatmul.mubr.f32.gmra.mrb[0].mxu0 %v71
    %v146 = vpop.f32.mrb[0].mxu0
    %v147 = vadd.f32 0.0, %v146
    %v148 = vpop.f32.mrb[0].mxu0
    %149 = vmatprep.mubr.f32.mxu0 0.0
    %150 = vmatmul.mubr.f32.gmra.mrb[0].mxu0 %v74
    %v151 = vpop.f32.mrb[0].mxu0
    %v152 = vadd.f32 0.0, %v151
    %v153 = vpop.f32.mrb[0].mxu0
    %154 = vdwg.mxu0
    %vm155 = vcmask 261120
    %156 = vst.msk [vmem:[#allocation2] sm:$0xff] %vm155, %v147
    %157 = vst.msk [vmem:[#allocation2 + $0x8] sm:$0xff] %vm155, %v152
    %v158 = vmul.f32 %v147, 5.656854
    %v159 = vmul.f32 %v152, 5.656854
    %v160 = vld [vmem:[%s3] sm:$0xff]
    %v161 = vadd.f32 %v158, %v160
    %v162 = vadd.f32 %v159, %v160
    %v163 = vld [vmem:[%s1] sm:$0x3]
    %vm164 = vcmp.eq.s32.totalorder %v163, 0
    %v165 = vsel %vm164, -1e+09, 0.0
    %v168 = vunpack.c.l.s4 1966171168
    %v169 = vunpack.c.0.s8 %v168
    %v170 = vlaneseq
    %v171 = vshrl.u32 %v170, 7
    %v172 = vsub.s32 %v169, %v171
    %v173 = vrot.slane %v165, %v172
    %v174 = vcombine.high %v173, %v173
    %v176 = vunpack.c.l.s4 1966171168
    %v177 = vunpack.c.0.s8 %v176
    %v178 = vlaneseq
    %v179 = vshrl.u32 %v178, 7
    %v180 = vsub.s32 %v177, %v179
    %v181 = vrot.slane %v173, %v180
    %v183 = vunpack.c.l.s4 1966171168
    %v184 = vunpack.c.0.s8 %v183
    %v185 = vlaneseq
    %v186 = vshrl.u32 %v185, 7
    %v187 = vsub.s32 %v184, %v186
    %v188 = vrot.slane %v174, %v187
    %v189 = vld [vmem:[%s4] sm:$0xff]
    %v190 = vld [vmem:[%s4 + $0x8] sm:$0xff]
    %v191 = vld [vmem:[%s4 + $0x10] sm:$0xff]
    %v192 = vld [vmem:[%s4 + $0x18] sm:$0xff]
    %v193 = vld [vmem:[%s5] sm:$0xff]
    %v194 = vld [vmem:[%s5 + $0x8] sm:$0xff]
    %v195 = vld [vmem:[%s5 + $0x10] sm:$0xff]
    %v196 = vld [vmem:[%s5 + $0x18] sm:$0xff]
    %v197 = vld [vmem:[%s6] sm:$0xff]
    %v198 = vld [vmem:[%s6 + $0x8] sm:$0xff]
    %v199 = vld [vmem:[%s6 + $0x10] sm:$0xff]
    %v200 = vld [vmem:[%s6 + $0x18] sm:$0xff]
    %v201 = vld [vmem:[%s7] sm:$0xff]
    %v202 = vld [vmem:[%s7 + $0x8] sm:$0xff]
    %v203 = vld [vmem:[%s7 + $0x10] sm:$0xff]
    %v204 = vld [vmem:[%s7 + $0x18] sm:$0xff]
    %v205 = vld [vmem:[%s7 + $0x20] sm:$0xff]
    %v206 = vld [vmem:[%s7 + $0x28] sm:$0xff]
    %v207 = vld [vmem:[%s7 + $0x30] sm:$0xff]
    %v208 = vld [vmem:[%s7 + $0x38] sm:$0xff]
    %v209 = vld [vmem:[%s8] sm:$0xff]
    %v210 = vld [vmem:[%s8 + $0x8] sm:$0x1]
    %v211 = vld [vmem:[%s9] sm:$0x1]
    %v212 = vsel %vm155, %v161, 0.0
    %213 = vadd.xlane.f32.xlu0 %v212
    %v214 = vpop.xlane.xlu0 %213
    %v215 = vsel %vm155, %v162, 0.0
    %216 = vadd.xlane.f32.xlu0 %v215
    %v217 = vpop.xlane.xlu0 %216
    %v218 = vrcp.pop 32.0
    %v219 = vmul.f32 %v214, %v218
    %v220 = vmul.f32 %v217, %v218
    %v221 = vmul.f32 %v161, %v161
    %v222 = vmul.f32 %v162, %v162
    %v223 = vsel %vm155, %v221, 0.0
    %224 = vadd.xlane.f32.xlu0 %v223
    %v225 = vpop.xlane.xlu0 %224
    %v226 = vsel %vm155, %v222, 0.0
    %227 = vadd.xlane.f32.xlu0 %v226
    %v228 = vpop.xlane.xlu0 %227
    %v229 = vmul.f32 %v225, %v218
    %v230 = vmul.f32 %v228, %v218
    %v231 = vmul.f32 %v219, %v219
    %v232 = vmul.f32 %v220, %v220
    %v233 = vsub.f32 %v229, %v231
    %v234 = vsub.f32 %v230, %v232
    %v235 = vsub.f32 %v161, %v219
    %v236 = vsub.f32 %v162, %v220
    %v237 = vadd.f32 %v233, 1e-05
    %v238 = vadd.f32 %v234, 1e-05
    %v239 = vrsqrt.pop %v237
    %v240 = vrsqrt.pop %v238
    %v241 = vmul.f32 %v235, %v239
    %v242 = vmul.f32 %v236, %v240
    %v243 = vlaneseq
    %v244 = vshrl.u32 %v243, 7
    %v245 = vsub.s32 0, %v244
    %v246 = vrot.slane %v209, %v245
    %v247 = vmul.f32 %v241, %v246
    %v248 = vmul.f32 %v242, %v246
    %v249 = vlaneseq
    %v250 = vshrl.u32 %v249, 7
    %v251 = vsub.s32 1, %v250
    %v252 = vrot.slane %v209, %v251
    %v253 = vadd.f32 %v247, %v252
    %v254 = vadd.f32 %v248, %v252
    %v256 = vsel %vm155, %v253, 0
    %v259 = vsel %vm155, %v254, 0
    %261 = vmatprep.subr.mxu0 0.0
    %262 = vmatpush1.msra.mxu0 %v189
    %263 = vmatprep.subr.mxu0 0.0
    %264 = vmatpush1.msra.mxu0 %v190
    %265 = vmatprep.subr.mxu0 0.0
    %266 = vmatpush1.msra.mxu0 %v191
    %267 = vmatprep.subr.mxu0 0.0
    %268 = vmatpush1.msra.mxu0 %v192
    %269 = vmatprep.subr.mxu0 0.0
    %270 = vmatpush1.msra.mxu0 0.0
    %271 = vmatprep.subr.mxu0 0.0
    %272 = vmatpush1.msra.mxu0 0.0
    %273 = vmatprep.subr.mxu0 0.0
    %274 = vmatpush1.msra.mxu0 0.0
    %275 = vmatprep.subr.mxu0 0.0
    %276 = vmatpush1.msra.mxu0 0.0
    %277 = vmatprep.subr.mxu0 0.0
    %278 = vmatpush1.msra.mxu0 0.0
    %279 = vmatprep.subr.mxu0 0.0
    %280 = vmatpush1.msra.mxu0 0.0
    %281 = vmatprep.subr.mxu0 0.0
    %282 = vmatpush1.msra.mxu0 0.0
    %283 = vmatprep.subr.mxu0 0.0
    %284 = vmatpush1.msra.mxu0 0.0
    %285 = vmatprep.subr.mxu0 0.0
    %286 = vmatpush1.msra.mxu0 0.0
    %287 = vmatprep.subr.mxu0 0.0
    %288 = vmatpush1.msra.mxu0 0.0
    %289 = vmatprep.subr.mxu0 0.0
    %290 = vmatpush1.msra.mxu0 0.0
    %291 = vmatprep.subr.mxu0 0.0
    %292 = vmatpush1.msra.mxu0 0.0
    %293 = vmatprep.subr.mxu0 0.0
    %294 = vmatpush1.msra.mxu0 0.0
    %295 = vmatprep.subr.mxu0 0.0
    %296 = vmatpush1.msra.mxu0 0.0
    %297 = vmatprep.subr.mxu0 0.0
    %298 = vmatpush1.msra.mxu0 0.0
    %299 = vmatprep.subr.mxu0 0.0
    %300 = vmatpush1.msra.mxu0 0.0
    %301 = vmatprep.subr.mxu0 0.0
    %302 = vmatpush1.msra.mxu0 0.0
    %303 = vmatprep.subr.mxu0 0.0
    %304 = vmatpush1.msra.mxu0 0.0
    %305 = vmatprep.subr.mxu0 0.0
    %306 = vmatpush1.msra.mxu0 0.0
    %307 = vmatprep.subr.mxu0 0.0
    %308 = vmatpush1.msra.mxu0 0.0
    %309 = vmatprep.subr.mxu0 0.0
    %310 = vmatpush1.msra.mxu0 0.0
    %311 = vmatprep.subr.mxu0 0.0
    %312 = vmatpush1.msra.mxu0 0.0
    %313 = vmatprep.subr.mxu0 0.0
    %314 = vmatpush1.msra.mxu0 0.0
    %315 = vmatprep.subr.mxu0 0.0
    %316 = vmatpush1.msra.mxu0 0.0
    %317 = vmatprep.subr.mxu0 0.0
    %318 = vmatpush1.msra.mxu0 0.0
    %319 = vmatprep.subr.mxu0 0.0
    %320 = vmatpush1.msra.mxu0 0.0
    %321 = vmatprep.subr.mxu0 0.0
    %322 = vmatpush1.msra.mxu0 0.0
    %323 = vmatprep.subr.mxu0 0.0
    %324 = vmatpush1.msra.mxu0 0.0
    %325 = vmatprep.mubr.f32.mxu0 0.0
    %326 = vmatmul.mubr.f32.gmra.mrb[0].mxu0 %v256
    %v327 = vpop.f32.mrb[0].mxu0
    %v328 = vadd.f32 0.0, %v327
    %v329 = vpop.f32.mrb[0].mxu0
    %330 = vmatprep.mubr.f32.mxu0 0.0
    %331 = vmatmul.mubr.f32.gmra.mrb[0].mxu0 %v259
    %v332 = vpop.f32.mrb[0].mxu0
    %v333 = vadd.f32 0.0, %v332
    %v334 = vpop.f32.mrb[0].mxu0
    %335 = vdwg.mxu0
    %v336 = vlaneseq
    %v337 = vshrl.u32 %v336, 7
    %v338 = vsub.s32 2, %v337
    %v339 = vrot.slane %v209, %v338
    %v340 = vadd.f32 %v328, %v339
    %v341 = vadd.f32 %v333, %v339
    %v342 = vlaneseq
    %v343 = vshrl.u32 %v342, 7
    %v344 = vsub.s32 3, %v343
    %v345 = vrot.slane %v209, %v344
    %347 = vrot.lane.b32.xlu0 %v345, 32
    %v348 = vpop.permute.xlu0 %347
    %v350 = vadd.f32 %v328, %v348
    %v351 = vadd.f32 %v333, %v348
    %v352 = vlaneseq
    %v353 = vshrl.u32 %v352, 7
    %v354 = vsub.s32 4, %v353
    %v355 = vrot.slane %v209, %v354
    %357 = vrot.lane.b32.xlu0 %v355, 64
    %v358 = vpop.permute.xlu0 %357
    %v360 = vadd.f32 %v328, %v358
    %v361 = vadd.f32 %v333, %v358
    %363 = vrot.lane.b32.xlu0 %v350, 96
    %v364 = vpop.permute.xlu0 %363
    %v366 = vsel %vm155, %v340, 0
    %v368 = vsel %vm155, %v364, 0
    %370 = vmatprep.subr.mxu0 0.0
    %371 = vmatpush1.xpose.msra.mxu0 %v368
    %372 = vmatprep.subr.mxu0 0.0
    %373 = vmatpush1.xpose.msra.mxu0 0.0
    %374 = vmatprep.subr.mxu0 0.0
    %375 = vmatpush1.xpose.msra.mxu0 0.0
    %376 = vmatprep.subr.mxu0 0.0
    %377 = vmatpush1.xpose.msra.mxu0 0.0
    %378 = vmatprep.subr.mxu0 0.0
    %379 = vmatpush1.xpose.msra.mxu0 0.0
    %380 = vmatprep.subr.mxu0 0.0
    %381 = vmatpush1.xpose.msra.mxu0 0.0
    %382 = vmatprep.subr.mxu0 0.0
    %383 = vmatpush1.xpose.msra.mxu0 0.0
    %384 = vmatprep.subr.mxu0 0.0
    %385 = vmatpush1.xpose.msra.mxu0 0.0
    %386 = vmatprep.subr.mxu0 0.0
    %387 = vmatpush1.xpose.msra.mxu0 0.0
    %388 = vmatprep.subr.mxu0 0.0
    %389 = vmatpush1.xpose.msra.mxu0 0.0
    %390 = vmatprep.subr.mxu0 0.0
    %391 = vmatpush1.xpose.msra.mxu0 0.0
    %392 = vmatprep.subr.mxu0 0.0
    %393 = vmatpush1.xpose.msra.mxu0 0.0
    %394 = vmatprep.subr.mxu0 0.0
    %395 = vmatpush1.xpose.msra.mxu0 0.0
    %396 = vmatprep.subr.mxu0 0.0
    %397 = vmatpush1.xpose.msra.mxu0 0.0
    %398 = vmatprep.subr.mxu0 0.0
    %399 = vmatpush1.xpose.msra.mxu0 0.0
    %400 = vmatprep.subr.mxu0 0.0
    %401 = vmatpush1.xpose.msra.mxu0 0.0
    %402 = vmatprep.subr.mxu0 0.0
    %403 = vmatpush1.xpose.msra.mxu0 0.0
    %404 = vmatprep.subr.mxu0 0.0
    %405 = vmatpush1.xpose.msra.mxu0 0.0
    %406 = vmatprep.subr.mxu0 0.0
    %407 = vmatpush1.xpose.msra.mxu0 0.0
    %408 = vmatprep.subr.mxu0 0.0
    %409 = vmatpush1.xpose.msra.mxu0 0.0
    %410 = vmatprep.subr.mxu0 0.0
    %411 = vmatpush1.xpose.msra.mxu0 0.0
    %412 = vmatprep.subr.mxu0 0.0
    %413 = vmatpush1.xpose.msra.mxu0 0.0
    %414 = vmatprep.subr.mxu0 0.0
    %415 = vmatpush1.xpose.msra.mxu0 0.0
    %416 = vmatprep.subr.mxu0 0.0
    %417 = vmatpush1.xpose.msra.mxu0 0.0
    %418 = vmatprep.subr.mxu0 0.0
    %419 = vmatpush1.xpose.msra.mxu0 0.0
    %420 = vmatprep.subr.mxu0 0.0
    %421 = vmatpush1.xpose.msra.mxu0 0.0
    %422 = vmatprep.subr.mxu0 0.0
    %423 = vmatpush1.xpose.msra.mxu0 0.0
    %424 = vmatprep.subr.mxu0 0.0
    %425 = vmatpush1.xpose.msra.mxu0 0.0
    %426 = vmatprep.subr.mxu0 0.0
    %427 = vmatpush1.xpose.msra.mxu0 0.0
    %428 = vmatprep.subr.mxu0 0.0
    %429 = vmatpush1.xpose.msra.mxu0 0.0
    %430 = vmatprep.subr.mxu0 0.0
    %431 = vmatpush1.xpose.msra.mxu0 0.0
    %432 = vmatprep.subr.mxu0 0.0
    %433 = vmatpush1.xpose.msra.mxu0 0.0
    %434 = vmatprep.mubr.f32.mxu0 0.0
    %435 = vmatmul.mubr.f32.gmra.mrb[0].mxu0 %v366
    %v436 = vpop.f32.mrb[0].mxu0
    %v437 = vadd.f32 0.0, %v436
    %v438 = vpop.f32.mrb[0].mxu0
    %439 = vdwg.mxu0
    %441 = vrot.lane.b32.xlu0 %v351, 96
    %v442 = vpop.permute.xlu0 %441
    %v444 = vsel %vm155, %v341, 0
    %v446 = vsel %vm155, %v442, 0
    %448 = vmatprep.subr.mxu0 0.0
    %449 = vmatpush1.xpose.msra.mxu0 %v446
    %450 = vmatprep.subr.mxu0 0.0
    %451 = vmatpush1.xpose.msra.mxu0 0.0
    %452 = vmatprep.subr.mxu0 0.0
    %453 = vmatpush1.xpose.msra.mxu0 0.0
    %454 = vmatprep.subr.mxu0 0.0
    %455 = vmatpush1.xpose.msra.mxu0 0.0
    %456 = vmatprep.subr.mxu0 0.0
    %457 = vmatpush1.xpose.msra.mxu0 0.0
    %458 = vmatprep.subr.mxu0 0.0
    %459 = vmatpush1.xpose.msra.mxu0 0.0
    %460 = vmatprep.subr.mxu0 0.0
    %461 = vmatpush1.xpose.msra.mxu0 0.0
    %462 = vmatprep.subr.mxu0 0.0
    %463 = vmatpush1.xpose.msra.mxu0 0.0
    %464 = vmatprep.subr.mxu0 0.0
    %465 = vmatpush1.xpose.msra.mxu0 0.0
    %466 = vmatprep.subr.mxu0 0.0
    %467 = vmatpush1.xpose.msra.mxu0 0.0
    %468 = vmatprep.subr.mxu0 0.0
    %469 = vmatpush1.xpose.msra.mxu0 0.0
    %470 = vmatprep.subr.mxu0 0.0
    %471 = vmatpush1.xpose.msra.mxu0 0.0
    %472 = vmatprep.subr.mxu0 0.0
    %473 = vmatpush1.xpose.msra.mxu0 0.0
    %474 = vmatprep.subr.mxu0 0.0
    %475 = vmatpush1.xpose.msra.mxu0 0.0
    %476 = vmatprep.subr.mxu0 0.0
    %477 = vmatpush1.xpose.msra.mxu0 0.0
    %478 = vmatprep.subr.mxu0 0.0
    %479 = vmatpush1.xpose.msra.mxu0 0.0
    %480 = vmatprep.subr.mxu0 0.0
    %481 = vmatpush1.xpose.msra.mxu0 0.0
    %482 = vmatprep.subr.mxu0 0.0
    %483 = vmatpush1.xpose.msra.mxu0 0.0
    %484 = vmatprep.subr.mxu0 0.0
    %485 = vmatpush1.xpose.msra.mxu0 0.0
    %486 = vmatprep.subr.mxu0 0.0
    %487 = vmatpush1.xpose.msra.mxu0 0.0
    %488 = vmatprep.subr.mxu0 0.0
    %489 = vmatpush1.xpose.msra.mxu0 0.0
    %490 = vmatprep.subr.mxu0 0.0
    %491 = vmatpush1.xpose.msra.mxu0 0.0
    %492 = vmatprep.subr.mxu0 0.0
    %493 = vmatpush1.xpose.msra.mxu0 0.0
    %494 = vmatprep.subr.mxu0 0.0
    %495 = vmatpush1.xpose.msra.mxu0 0.0
    %496 = vmatprep.subr.mxu0 0.0
    %497 = vmatpush1.xpose.msra.mxu0 0.0
    %498 = vmatprep.subr.mxu0 0.0
    %499 = vmatpush1.xpose.msra.mxu0 0.0
    %500 = vmatprep.subr.mxu0 0.0
    %501 = vmatpush1.xpose.msra.mxu0 0.0
    %502 = vmatprep.subr.mxu0 0.0
    %503 = vmatpush1.xpose.msra.mxu0 0.0
    %504 = vmatprep.subr.mxu0 0.0
    %505 = vmatpush1.xpose.msra.mxu0 0.0
    %506 = vmatprep.subr.mxu0 0.0
    %507 = vmatpush1.xpose.msra.mxu0 0.0
    %508 = vmatprep.subr.mxu0 0.0
    %509 = vmatpush1.xpose.msra.mxu0 0.0
    %510 = vmatprep.subr.mxu0 0.0
    %511 = vmatpush1.xpose.msra.mxu0 0.0
    %512 = vmatprep.mubr.f32.mxu0 0.0
    %513 = vmatmul.mubr.f32.gmra.mrb[0].mxu0 %v444
    %v514 = vpop.f32.mrb[0].mxu0
    %v515 = vadd.f32 0.0, %v514
    %v516 = vpop.f32.mrb[0].mxu0
    %517 = vdwg.mxu0
    %v518 = vmul.f32 %v437, 0.17677669
    %v519 = vmul.f32 %v515, 0.17677669
    %v520 = vlaneseq
    %v521 = vshrl.u32 %v520, 7
    %v522 = vsub.s32 0, %v521
    %v523 = vrot.slane %v181, %v522
    %v524 = vlaneseq
    %v525 = vshrl.u32 %v524, 7
    %v526 = vsub.s32 0, %v525
    %v527 = vrot.slane %v188, %v526
    %v530 = vadd.f32 %v518, %v523
    %v531 = vadd.f32 %v519, %v527
    %vm532 = vcmask 64512
    %v533 = vsel %vm532, %v530, -inf
    %534 = vmax.xlane.f32.xlu0 %v533
    %v535 = vpop.xlane.xlu0 %534
    %v536 = vsel %vm532, %v531, -inf
    %537 = vmax.xlane.f32.xlu0 %v536
    %v538 = vpop.xlane.xlu0 %537
    %v539 = vsub.f32 %v530, %v535
    %v540 = vsub.f32 %v531, %v538
    %v541 = vmul.f32 %v539, 1.442695
    %v542 = vpow.pop %v541
    %v543 = vmul.f32 %v540, 1.442695
    %v544 = vpow.pop %v543
    %v545 = vsel %vm532, %v542, 0.0
    %546 = vadd.xlane.f32.xlu0 %v545
    %v547 = vpop.xlane.xlu0 %546
    %v548 = vsel %vm532, %v544, 0.0
    %549 = vadd.xlane.f32.xlu0 %v548
    %v550 = vpop.xlane.xlu0 %549
    %v551 = vrcp.pop %v547
    %v552 = vrcp.pop %v550
    %v553 = vmul.f32 %v542, %v551
    %v554 = vmul.f32 %v544, %v552
    %555 = vst.msk [vmem:[%s14] sm:$0xff] %vm532, %v553
    %556 = vst.msk [vmem:[%s14 + $0x8] sm:$0xff] %vm532, %v554
    %558 = vrot.lane.b32.xlu0 %v360, 64
    %v559 = vpop.permute.xlu0 %558
    %v562 = vsel %vm532, %v553, 0
    %564 = vmatprep.subr.mxu0 0.0
    %565 = vmatpush1.msra.mxu0 %v559
    %566 = vmatprep.subr.mxu0 0.0
    %567 = vmatpush1.msra.mxu0 0.0
    %568 = vmatprep.subr.mxu0 0.0
    %569 = vmatpush1.msra.mxu0 0.0
    %570 = vmatprep.subr.mxu0 0.0
    %571 = vmatpush1.msra.mxu0 0.0
    %572 = vmatprep.subr.mxu0 0.0
    %573 = vmatpush1.msra.mxu0 0.0
    %574 = vmatprep.subr.mxu0 0.0
    %575 = vmatpush1.msra.mxu0 0.0
    %576 = vmatprep.subr.mxu0 0.0
    %577 = vmatpush1.msra.mxu0 0.0
    %578 = vmatprep.subr.mxu0 0.0
    %579 = vmatpush1.msra.mxu0 0.0
    %580 = vmatprep.subr.mxu0 0.0
    %581 = vmatpush1.msra.mxu0 0.0
    %582 = vmatprep.subr.mxu0 0.0
    %583 = vmatpush1.msra.mxu0 0.0
    %584 = vmatprep.subr.mxu0 0.0
    %585 = vmatpush1.msra.mxu0 0.0
    %586 = vmatprep.subr.mxu0 0.0
    %587 = vmatpush1.msra.mxu0 0.0
    %588 = vmatprep.subr.mxu0 0.0
    %589 = vmatpush1.msra.mxu0 0.0
    %590 = vmatprep.subr.mxu0 0.0
    %591 = vmatpush1.msra.mxu0 0.0
    %592 = vmatprep.subr.mxu0 0.0
    %593 = vmatpush1.msra.mxu0 0.0
    %594 = vmatprep.subr.mxu0 0.0
    %595 = vmatpush1.msra.mxu0 0.0
    %596 = vmatprep.subr.mxu0 0.0
    %597 = vmatpush1.msra.mxu0 0.0
    %598 = vmatprep.subr.mxu0 0.0
    %599 = vmatpush1.msra.mxu0 0.0
    %600 = vmatprep.subr.mxu0 0.0
    %601 = vmatpush1.msra.mxu0 0.0
    %602 = vmatprep.subr.mxu0 0.0
    %603 = vmatpush1.msra.mxu0 0.0
    %604 = vmatprep.subr.mxu0 0.0
    %605 = vmatpush1.msra.mxu0 0.0
    %606 = vmatprep.subr.mxu0 0.0
    %607 = vmatpush1.msra.mxu0 0.0
    %608 = vmatprep.subr.mxu0 0.0
    %609 = vmatpush1.msra.mxu0 0.0
    %610 = vmatprep.subr.mxu0 0.0
    %611 = vmatpush1.msra.mxu0 0.0
    %612 = vmatprep.subr.mxu0 0.0
    %613 = vmatpush1.msra.mxu0 0.0
    %614 = vmatprep.subr.mxu0 0.0
    %615 = vmatpush1.msra.mxu0 0.0
    %616 = vmatprep.subr.mxu0 0.0
    %617 = vmatpush1.msra.mxu0 0.0
    %618 = vmatprep.subr.mxu0 0.0
    %619 = vmatpush1.msra.mxu0 0.0
    %620 = vmatprep.subr.mxu0 0.0
    %621 = vmatpush1.msra.mxu0 0.0
    %622 = vmatprep.subr.mxu0 0.0
    %623 = vmatpush1.msra.mxu0 0.0
    %624 = vmatprep.subr.mxu0 0.0
    %625 = vmatpush1.msra.mxu0 0.0
    %626 = vmatprep.subr.mxu0 0.0
    %627 = vmatpush1.msra.mxu0 0.0
    %628 = vmatprep.mubr.f32.mxu0 0.0
    %629 = vmatmul.mubr.f32.gmra.mrb[0].mxu0 %v562
    %v630 = vpop.f32.mrb[0].mxu0
    %v631 = vadd.f32 0.0, %v630
    %v632 = vpop.f32.mrb[0].mxu0
    %633 = vdwg.mxu0
    %635 = vrot.lane.b32.xlu0 %v361, 64
    %v636 = vpop.permute.xlu0 %635
    %v639 = vsel %vm532, %v554, 0
    %641 = vmatprep.subr.mxu0 0.0
    %642 = vmatpush1.msra.mxu0 %v636
    %643 = vmatprep.subr.mxu0 0.0
    %644 = vmatpush1.msra.mxu0 0.0
    %645 = vmatprep.subr.mxu0 0.0
    %646 = vmatpush1.msra.mxu0 0.0
    %647 = vmatprep.subr.mxu0 0.0
    %648 = vmatpush1.msra.mxu0 0.0
    %649 = vmatprep.subr.mxu0 0.0
    %650 = vmatpush1.msra.mxu0 0.0
    %651 = vmatprep.subr.mxu0 0.0
    %652 = vmatpush1.msra.mxu0 0.0
    %653 = vmatprep.subr.mxu0 0.0
    %654 = vmatpush1.msra.mxu0 0.0
    %655 = vmatprep.subr.mxu0 0.0
    %656 = vmatpush1.msra.mxu0 0.0
    %657 = vmatprep.subr.mxu0 0.0
    %658 = vmatpush1.msra.mxu0 0.0
    %659 = vmatprep.subr.mxu0 0.0
    %660 = vmatpush1.msra.mxu0 0.0
    %661 = vmatprep.subr.mxu0 0.0
    %662 = vmatpush1.msra.mxu0 0.0
    %663 = vmatprep.subr.mxu0 0.0
    %664 = vmatpush1.msra.mxu0 0.0
    %665 = vmatprep.subr.mxu0 0.0
    %666 = vmatpush1.msra.mxu0 0.0
    %667 = vmatprep.subr.mxu0 0.0
    %668 = vmatpush1.msra.mxu0 0.0
    %669 = vmatprep.subr.mxu0 0.0
    %670 = vmatpush1.msra.mxu0 0.0
    %671 = vmatprep.subr.mxu0 0.0
    %672 = vmatpush1.msra.mxu0 0.0
    %673 = vmatprep.subr.mxu0 0.0
    %674 = vmatpush1.msra.mxu0 0.0
    %675 = vmatprep.subr.mxu0 0.0
    %676 = vmatpush1.msra.mxu0 0.0
    %677 = vmatprep.subr.mxu0 0.0
    %678 = vmatpush1.msra.mxu0 0.0
    %679 = vmatprep.subr.mxu0 0.0
    %680 = vmatpush1.msra.mxu0 0.0
    %681 = vmatprep.subr.mxu0 0.0
    %682 = vmatpush1.msra.mxu0 0.0
    %683 = vmatprep.subr.mxu0 0.0
    %684 = vmatpush1.msra.mxu0 0.0
    %685 = vmatprep.subr.mxu0 0.0
    %686 = vmatpush1.msra.mxu0 0.0
    %687 = vmatprep.subr.mxu0 0.0
    %688 = vmatpush1.msra.mxu0 0.0
    %689 = vmatprep.subr.mxu0 0.0
    %690 = vmatpush1.msra.mxu0 0.0
    %691 = vmatprep.subr.mxu0 0.0
    %692 = vmatpush1.msra.mxu0 0.0
    %693 = vmatprep.subr.mxu0 0.0
    %694 = vmatpush1.msra.mxu0 0.0
    %695 = vmatprep.subr.mxu0 0.0
    %696 = vmatpush1.msra.mxu0 0.0
    %697 = vmatprep.subr.mxu0 0.0
    %698 = vmatpush1.msra.mxu0 0.0
    %699 = vmatprep.subr.mxu0 0.0
    %700 = vmatpush1.msra.mxu0 0.0
    %701 = vmatprep.subr.mxu0 0.0
    %702 = vmatpush1.msra.mxu0 0.0
    %703 = vmatprep.subr.mxu0 0.0
    %704 = vmatpush1.msra.mxu0 0.0
    %705 = vmatprep.mubr.f32.mxu0 0.0
    %706 = vmatmul.mubr.f32.gmra.mrb[0].mxu0 %v639
    %v707 = vpop.f32.mrb[0].mxu0
    %v708 = vadd.f32 0.0, %v707
    %v709 = vpop.f32.mrb[0].mxu0
    %710 = vdwg.mxu0
    %v712 = vsel %vm155, %v631, 0
    %v715 = vsel %vm155, %v708, 0
    %717 = vmatprep.subr.mxu0 0.0
    %718 = vmatpush1.msra.mxu0 %v193
    %719 = vmatprep.subr.mxu0 0.0
    %720 = vmatpush1.msra.mxu0 %v194
    %721 = vmatprep.subr.mxu0 0.0
    %722 = vmatpush1.msra.mxu0 %v195
    %723 = vmatprep.subr.mxu0 0.0
    %724 = vmatpush1.msra.mxu0 %v196
    %725 = vmatprep.subr.mxu0 0.0
    %726 = vmatpush1.msra.mxu0 0.0
    %727 = vmatprep.subr.mxu0 0.0
    %728 = vmatpush1.msra.mxu0 0.0
    %729 = vmatprep.subr.mxu0 0.0
    %730 = vmatpush1.msra.mxu0 0.0
    %731 = vmatprep.subr.mxu0 0.0
    %732 = vmatpush1.msra.mxu0 0.0
    %733 = vmatprep.subr.mxu0 0.0
    %734 = vmatpush1.msra.mxu0 0.0
    %735 = vmatprep.subr.mxu0 0.0
    %736 = vmatpush1.msra.mxu0 0.0
    %737 = vmatprep.subr.mxu0 0.0
    %738 = vmatpush1.msra.mxu0 0.0
    %739 = vmatprep.subr.mxu0 0.0
    %740 = vmatpush1.msra.mxu0 0.0
    %741 = vmatprep.subr.mxu0 0.0
    %742 = vmatpush1.msra.mxu0 0.0
    %743 = vmatprep.subr.mxu0 0.0
    %744 = vmatpush1.msra.mxu0 0.0
    %745 = vmatprep.subr.mxu0 0.0
    %746 = vmatpush1.msra.mxu0 0.0
    %747 = vmatprep.subr.mxu0 0.0
    %748 = vmatpush1.msra.mxu0 0.0
    %749 = vmatprep.subr.mxu0 0.0
    %750 = vmatpush1.msra.mxu0 0.0
    %751 = vmatprep.subr.mxu0 0.0
    %752 = vmatpush1.msra.mxu0 0.0
    %753 = vmatprep.subr.mxu0 0.0
    %754 = vmatpush1.msra.mxu0 0.0
    %755 = vmatprep.subr.mxu0 0.0
    %756 = vmatpush1.msra.mxu0 0.0
    %757 = vmatprep.subr.mxu0 0.0
    %758 = vmatpush1.msra.mxu0 0.0
    %759 = vmatprep.subr.mxu0 0.0
    %760 = vmatpush1.msra.mxu0 0.0
    %761 = vmatprep.subr.mxu0 0.0
    %762 = vmatpush1.msra.mxu0 0.0
    %763 = vmatprep.subr.mxu0 0.0
    %764 = vmatpush1.msra.mxu0 0.0
    %765 = vmatprep.subr.mxu0 0.0
    %766 = vmatpush1.msra.mxu0 0.0
    %767 = vmatprep.subr.mxu0 0.0
    %768 = vmatpush1.msra.mxu0 0.0
    %769 = vmatprep.subr.mxu0 0.0
    %770 = vmatpush1.msra.mxu0 0.0
    %771 = vmatprep.subr.mxu0 0.0
    %772 = vmatpush1.msra.mxu0 0.0
    %773 = vmatprep.subr.mxu0 0.0
    %774 = vmatpush1.msra.mxu0 0.0
    %775 = vmatprep.subr.mxu0 0.0
    %776 = vmatpush1.msra.mxu0 0.0
    %777 = vmatprep.subr.mxu0 0.0
    %778 = vmatpush1.msra.mxu0 0.0
    %779 = vmatprep.subr.mxu0 0.0
    %780 = vmatpush1.msra.mxu0 0.0
    %781 = vmatprep.mubr.f32.mxu0 0.0
    %782 = vmatmul.mubr.f32.gmra.mrb[0].mxu0 %v712
    %v783 = vpop.f32.mrb[0].mxu0
    %v784 = vadd.f32 0.0, %v783
    %v785 = vpop.f32.mrb[0].mxu0
    %786 = vmatprep.mubr.f32.mxu0 0.0
    %787 = vmatmul.mubr.f32.gmra.mrb[0].mxu0 %v715
    %v788 = vpop.f32.mrb[0].mxu0
    %v789 = vadd.f32 0.0, %v788
    %v790 = vpop.f32.mrb[0].mxu0
    %791 = vdwg.mxu0
    %v792 = vadd.f32 %v161, %v784
    %v793 = vadd.f32 %v162, %v789
    %v794 = vlaneseq
    %v795 = vshrl.u32 %v794, 7
    %v796 = vsub.s32 5, %v795
    %v797 = vrot.slane %v209, %v796
    %v798 = vadd.f32 %v792, %v797
    %v799 = vadd.f32 %v793, %v797
    %v800 = vsel %vm155, %v798, 0.0
    %801 = vadd.xlane.f32.xlu0 %v800
    %v802 = vpop.xlane.xlu0 %801
    %v803 = vsel %vm155, %v799, 0.0
    %804 = vadd.xlane.f32.xlu0 %v803
    %v805 = vpop.xlane.xlu0 %804
    %v806 = vmul.f32 %v802, %v218
    %v807 = vmul.f32 %v805, %v218
    %v808 = vmul.f32 %v798, %v798
    %v809 = vmul.f32 %v799, %v799
    %v810 = vsel %vm155, %v808, 0.0
    %811 = vadd.xlane.f32.xlu0 %v810
    %v812 = vpop.xlane.xlu0 %811
    %v813 = vsel %vm155, %v809, 0.0
    %814 = vadd.xlane.f32.xlu0 %v813
    %v815 = vpop.xlane.xlu0 %814
    %v816 = vmul.f32 %v812, %v218
    %v817 = vmul.f32 %v815, %v218
    %v818 = vmul.f32 %v806, %v806
    %v819 = vmul.f32 %v807, %v807
    %v820 = vsub.f32 %v816, %v818
    %v821 = vsub.f32 %v817, %v819
    %v822 = vsub.f32 %v798, %v806
    %v823 = vsub.f32 %v799, %v807
    %v824 = vadd.f32 %v820, 1e-05
    %v825 = vadd.f32 %v821, 1e-05
    %v826 = vrsqrt.pop %v824
    %v827 = vrsqrt.pop %v825
    %v828 = vmul.f32 %v822, %v826
    %v829 = vmul.f32 %v823, %v827
    %v830 = vlaneseq
    %v831 = vshrl.u32 %v830, 7
    %v832 = vsub.s32 6, %v831
    %v833 = vrot.slane %v209, %v832
    %v834 = vmul.f32 %v828, %v833
    %v835 = vmul.f32 %v829, %v833
    %v836 = vlaneseq
    %v837 = vshrl.u32 %v836, 7
    %v838 = vsub.s32 7, %v837
    %v839 = vrot.slane %v209, %v838
    %v840 = vadd.f32 %v834, %v839
    %v841 = vadd.f32 %v835, %v839
    %v843 = vlaneseq
    %v844 = vshrl.u32 %v843, 7
    %v845 = vsub.s32 0, %v844
    %v846 = vrot.slane %v211, %v845
    %v849 = vsel %vm155, %v840, 0
    %v852 = vsel %vm155, %v841, 0
    %854 = vmatprep.subr.mxu0 0.0
    %855 = vmatpush1.msra.mxu0 %v197
    %856 = vmatprep.subr.mxu0 0.0
    %857 = vmatpush1.msra.mxu0 %v198
    %858 = vmatprep.subr.mxu0 0.0
    %859 = vmatpush1.msra.mxu0 %v199
    %860 = vmatprep.subr.mxu0 0.0
    %861 = vmatpush1.msra.mxu0 %v200
    %862 = vmatprep.subr.mxu0 0.0
    %863 = vmatpush1.msra.mxu0 0.0
    %864 = vmatprep.subr.mxu0 0.0
    %865 = vmatpush1.msra.mxu0 0.0
    %866 = vmatprep.subr.mxu0 0.0
    %867 = vmatpush1.msra.mxu0 0.0
    %868 = vmatprep.subr.mxu0 0.0
    %869 = vmatpush1.msra.mxu0 0.0
    %870 = vmatprep.subr.mxu0 0.0
    %871 = vmatpush1.msra.mxu0 0.0
    %872 = vmatprep.subr.mxu0 0.0
    %873 = vmatpush1.msra.mxu0 0.0
    %874 = vmatprep.subr.mxu0 0.0
    %875 = vmatpush1.msra.mxu0 0.0
    %876 = vmatprep.subr.mxu0 0.0
    %877 = vmatpush1.msra.mxu0 0.0
    %878 = vmatprep.subr.mxu0 0.0
    %879 = vmatpush1.msra.mxu0 0.0
    %880 = vmatprep.subr.mxu0 0.0
    %881 = vmatpush1.msra.mxu0 0.0
    %882 = vmatprep.subr.mxu0 0.0
    %883 = vmatpush1.msra.mxu0 0.0
    %884 = vmatprep.subr.mxu0 0.0
    %885 = vmatpush1.msra.mxu0 0.0
    %886 = vmatprep.subr.mxu0 0.0
    %887 = vmatpush1.msra.mxu0 0.0
    %888 = vmatprep.subr.mxu0 0.0
    %889 = vmatpush1.msra.mxu0 0.0
    %890 = vmatprep.subr.mxu0 0.0
    %891 = vmatpush1.msra.mxu0 0.0
    %892 = vmatprep.subr.mxu0 0.0
    %893 = vmatpush1.msra.mxu0 0.0
    %894 = vmatprep.subr.mxu0 0.0
    %895 = vmatpush1.msra.mxu0 0.0
    %896 = vmatprep.subr.mxu0 0.0
    %897 = vmatpush1.msra.mxu0 0.0
    %898 = vmatprep.subr.mxu0 0.0
    %899 = vmatpush1.msra.mxu0 0.0
    %900 = vmatprep.subr.mxu0 0.0
    %901 = vmatpush1.msra.mxu0 0.0
    %902 = vmatprep.subr.mxu0 0.0
    %903 = vmatpush1.msra.mxu0 0.0
    %904 = vmatprep.subr.mxu0 0.0
    %905 = vmatpush1.msra.mxu0 0.0
    %906 = vmatprep.subr.mxu0 0.0
    %907 = vmatpush1.msra.mxu0 0.0
    %908 = vmatprep.subr.mxu0 0.0
    %909 = vmatpush1.msra.mxu0 0.0
    %910 = vmatprep.subr.mxu0 0.0
    %911 = vmatpush1.msra.mxu0 0.0
    %912 = vmatprep.subr.mxu0 0.0
    %913 = vmatpush1.msra.mxu0 0.0
    %914 = vmatprep.subr.mxu0 0.0
    %915 = vmatpush1.msra.mxu0 0.0
    %916 = vmatprep.subr.mxu0 0.0
    %917 = vmatpush1.msra.mxu0 0.0
    %918 = vmatprep.mubr.f32.mxu0 0.0
    %919 = vmatmul.mubr.f32.gmra.mrb[0].mxu0 %v849
    %v920 = vpop.f32.mrb[0].mxu0
    %v921 = vadd.f32 %v846, %v920
    %v922 = vpop.f32.mrb[0].mxu0
    %923 = vmatprep.mubr.f32.mxu0 0.0
    %924 = vmatmul.mubr.f32.gmra.mrb[0].mxu0 %v852
    %v925 = vpop.f32.mrb[0].mxu0
    %v926 = vadd.f32 %v846, %v925
    %v927 = vpop.f32.mrb[0].mxu0
    %928 = vdwg.mxu0
    %v929 = vmax.f32 %v921, 0.0
    %v930 = vmax.f32 %v926, 0.0
    %vm931 = vcmask 523264
    %v933 = vsel %vm931, %v929, 0
    %v936 = vsel %vm931, %v930, 0
    %938 = vmatprep.subr.mxu0 0.0
    %939 = vmatpush1.msra.mxu0 %v201
    %940 = vmatprep.subr.mxu0 0.0
    %941 = vmatpush1.msra.mxu0 %v202
    %942 = vmatprep.subr.mxu0 0.0
    %943 = vmatpush1.msra.mxu0 %v203
    %944 = vmatprep.subr.mxu0 0.0
    %945 = vmatpush1.msra.mxu0 %v204
    %946 = vmatprep.subr.mxu0 0.0
    %947 = vmatpush1.msra.mxu0 %v205
    %948 = vmatprep.subr.mxu0 0.0
    %949 = vmatpush1.msra.mxu0 %v206
    %950 = vmatprep.subr.mxu0 0.0
    %951 = vmatpush1.msra.mxu0 %v207
    %952 = vmatprep.subr.mxu0 0.0
    %953 = vmatpush1.msra.mxu0 %v208
    %954 = vmatprep.subr.mxu0 0.0
    %955 = vmatpush1.msra.mxu0 0.0
    %956 = vmatprep.subr.mxu0 0.0
    %957 = vmatpush1.msra.mxu0 0.0
    %958 = vmatprep.subr.mxu0 0.0
    %959 = vmatpush1.msra.mxu0 0.0
    %960 = vmatprep.subr.mxu0 0.0
    %961 = vmatpush1.msra.mxu0 0.0
    %962 = vmatprep.subr.mxu0 0.0
    %963 = vmatpush1.msra.mxu0 0.0
    %964 = vmatprep.subr.mxu0 0.0
    %965 = vmatpush1.msra.mxu0 0.0
    %966 = vmatprep.subr.mxu0 0.0
    %967 = vmatpush1.msra.mxu0 0.0
    %968 = vmatprep.subr.mxu0 0.0
    %969 = vmatpush1.msra.mxu0 0.0
    %970 = vmatprep.subr.mxu0 0.0
    %971 = vmatpush1.msra.mxu0 0.0
    %972 = vmatprep.subr.mxu0 0.0
    %973 = vmatpush1.msra.mxu0 0.0
    %974 = vmatprep.subr.mxu0 0.0
    %975 = vmatpush1.msra.mxu0 0.0
    %976 = vmatprep.subr.mxu0 0.0
    %977 = vmatpush1.msra.mxu0 0.0
    %978 = vmatprep.subr.mxu0 0.0
    %979 = vmatpush1.msra.mxu0 0.0
    %980 = vmatprep.subr.mxu0 0.0
    %981 = vmatpush1.msra.mxu0 0.0
    %982 = vmatprep.subr.mxu0 0.0
    %983 = vmatpush1.msra.mxu0 0.0
    %984 = vmatprep.subr.mxu0 0.0
    %985 = vmatpush1.msra.mxu0 0.0
    %986 = vmatprep.subr.mxu0 0.0
    %987 = vmatpush1.msra.mxu0 0.0
    %988 = vmatprep.subr.mxu0 0.0
    %989 = vmatpush1.msra.mxu0 0.0
    %990 = vmatprep.subr.mxu0 0.0
    %991 = vmatpush1.msra.mxu0 0.0
    %992 = vmatprep.subr.mxu0 0.0
    %993 = vmatpush1.msra.mxu0 0.0
    %994 = vmatprep.subr.mxu0 0.0
    %995 = vmatpush1.msra.mxu0 0.0
    %996 = vmatprep.subr.mxu0 0.0
    %997 = vmatpush1.msra.mxu0 0.0
    %998 = vmatprep.subr.mxu0 0.0
    %999 = vmatpush1.msra.mxu0 0.0
    %1000 = vmatprep.subr.mxu0 0.0
    %1001 = vmatpush1.msra.mxu0 0.0
    %1002 = vmatprep.mubr.f32.mxu0 0.0
    %1003 = vmatmul.mubr.f32.gmra.mrb[0].mxu0 %v933
    %v1004 = vpop.f32.mrb[0].mxu0
    %v1005 = vadd.f32 0.0, %v1004
    %v1006 = vpop.f32.mrb[0].mxu0
    %1007 = vmatprep.mubr.f32.mxu0 0.0
    %1008 = vmatmul.mubr.f32.gmra.mrb[0].mxu0 %v936
    %v1009 = vpop.f32.mrb[0].mxu0
    %v1010 = vadd.f32 0.0, %v1009
    %v1011 = vpop.f32.mrb[0].mxu0
    %1012 = vdwg.mxu0
    %v1013 = vadd.f32 %v798, %v1005
    %v1014 = vadd.f32 %v799, %v1010
    %v1015 = vlaneseq
    %v1016 = vshrl.u32 %v1015, 7
    %v1017 = vsub.s32 0, %v1016
    %v1018 = vrot.slane %v210, %v1017
    %v1019 = vadd.f32 %v1013, %v1018
    %v1020 = vadd.f32 %v1014, %v1018
    %s1021 = scalar_lea.vmem %s4, 32
    %v1022 = vld [vmem:[%s1021] sm:$0xff]
    %v1023 = vld [vmem:[%s1021 + $0x8] sm:$0xff]
    %v1024 = vld [vmem:[%s1021 + $0x10] sm:$0xff]
    %v1025 = vld [vmem:[%s1021 + $0x18] sm:$0xff]
    %s1026 = scalar_lea.vmem %s5, 32
    %v1027 = vld [vmem:[%s1026] sm:$0xff]
    %v1028 = vld [vmem:[%s1026 + $0x8] sm:$0xff]
    %v1029 = vld [vmem:[%s1026 + $0x10] sm:$0xff]
    %v1030 = vld [vmem:[%s1026 + $0x18] sm:$0xff]
    %s1031 = scalar_lea.vmem %s6, 32
    %v1032 = vld [vmem:[%s1031] sm:$0xff]
    %v1033 = vld [vmem:[%s1031 + $0x8] sm:$0xff]
    %v1034 = vld [vmem:[%s1031 + $0x10] sm:$0xff]
    %v1035 = vld [vmem:[%s1031 + $0x18] sm:$0xff]
    %s1036 = scalar_lea.vmem %s7, 64
    %v1037 = vld [vmem:[%s1036] sm:$0xff]
    %v1038 = vld [vmem:[%s1036 + $0x8] sm:$0xff]
    %v1039 = vld [vmem:[%s1036 + $0x10] sm:$0xff]
    %v1040 = vld [vmem:[%s1036 + $0x18] sm:$0xff]
    %v1041 = vld [vmem:[%s1036 + $0x20] sm:$0xff]
    %v1042 = vld [vmem:[%s1036 + $0x28] sm:$0xff]
    %v1043 = vld [vmem:[%s1036 + $0x30] sm:$0xff]
    %v1044 = vld [vmem:[%s1036 + $0x38] sm:$0xff]
    %s1045 = scalar_lea.vmem %s8, 16
    %v1046 = vld [vmem:[%s1045] sm:$0xff]
    %v1047 = vld [vmem:[%s1045 + $0x8] sm:$0x1]
    %s1048 = scalar_lea.vmem %s9, 1
    %v1049 = vld [vmem:[%s1048] sm:$0x1]
    %v1050 = vsel %vm155, %v1019, 0.0
    %1051 = vadd.xlane.f32.xlu0 %v1050
    %v1052 = vpop.xlane.xlu0 %1051
    %v1053 = vsel %vm155, %v1020, 0.0
    %1054 = vadd.xlane.f32.xlu0 %v1053
    %v1055 = vpop.xlane.xlu0 %1054
    %v1056 = vmul.f32 %v1052, %v218
    %v1057 = vmul.f32 %v1055, %v218
    %v1058 = vmul.f32 %v1019, %v1019
    %v1059 = vmul.f32 %v1020, %v1020
    %v1060 = vsel %vm155, %v1058, 0.0
    %1061 = vadd.xlane.f32.xlu0 %v1060
    %v1062 = vpop.xlane.xlu0 %1061
    %v1063 = vsel %vm155, %v1059, 0.0
    %1064 = vadd.xlane.f32.xlu0 %v1063
    %v1065 = vpop.xlane.xlu0 %1064
    %v1066 = vmul.f32 %v1062, %v218
    %v1067 = vmul.f32 %v1065, %v218
    %v1068 = vmul.f32 %v1056, %v1056
    %v1069 = vmul.f32 %v1057, %v1057
    %v1070 = vsub.f32 %v1066, %v1068
    %v1071 = vsub.f32 %v1067, %v1069
    %v1072 = vsub.f32 %v1019, %v1056
    %v1073 = vsub.f32 %v1020, %v1057
    %v1074 = vadd.f32 %v1070, 1e-05
    %v1075 = vadd.f32 %v1071, 1e-05
    %v1076 = vrsqrt.pop %v1074
    %v1077 = vrsqrt.pop %v1075
    %v1078 = vmul.f32 %v1072, %v1076
    %v1079 = vmul.f32 %v1073, %v1077
    %v1080 = vlaneseq
    %v1081 = vshrl.u32 %v1080, 7
    %v1082 = vsub.s32 0, %v1081
    %v1083 = vrot.slane %v1046, %v1082
    %v1084 = vmul.f32 %v1078, %v1083
    %v1085 = vmul.f32 %v1079, %v1083
    %v1086 = vlaneseq
    %v1087 = vshrl.u32 %v1086, 7
    %v1088 = vsub.s32 1, %v1087
    %v1089 = vrot.slane %v1046, %v1088
    %v1090 = vadd.f32 %v1084, %v1089
    %v1091 = vadd.f32 %v1085, %v1089
    %v1093 = vsel %vm155, %v1090, 0
    %v1096 = vsel %vm155, %v1091, 0
    %1098 = vmatprep.subr.mxu0 0.0
    %1099 = vmatpush1.msra.mxu0 %v1022
    %1100 = vmatprep.subr.mxu0 0.0
    %1101 = vmatpush1.msra.mxu0 %v1023
    %1102 = vmatprep.subr.mxu0 0.0
    %1103 = vmatpush1.msra.mxu0 %v1024
    %1104 = vmatprep.subr.mxu0 0.0
    %1105 = vmatpush1.msra.mxu0 %v1025
    %1106 = vmatprep.subr.mxu0 0.0
    %1107 = vmatpush1.msra.mxu0 0.0
    %1108 = vmatprep.subr.mxu0 0.0
    %1109 = vmatpush1.msra.mxu0 0.0
    %1110 = vmatprep.subr.mxu0 0.0
    %1111 = vmatpush1.msra.mxu0 0.0
    %1112 = vmatprep.subr.mxu0 0.0
    %1113 = vmatpush1.msra.mxu0 0.0
    %1114 = vmatprep.subr.mxu0 0.0
    %1115 = vmatpush1.msra.mxu0 0.0
    %1116 = vmatprep.subr.mxu0 0.0
    %1117 = vmatpush1.msra.mxu0 0.0
    %1118 = vmatprep.subr.mxu0 0.0
    %1119 = vmatpush1.msra.mxu0 0.0
    %1120 = vmatprep.subr.mxu0 0.0
    %1121 = vmatpush1.msra.mxu0 0.0
    %1122 = vmatprep.subr.mxu0 0.0
    %1123 = vmatpush1.msra.mxu0 0.0
    %1124 = vmatprep.subr.mxu0 0.0
    %1125 = vmatpush1.msra.mxu0 0.0
    %1126 = vmatprep.subr.mxu0 0.0
    %1127 = vmatpush1.msra.mxu0 0.0
    %1128 = vmatprep.subr.mxu0 0.0
    %1129 = vmatpush1.msra.mxu0 0.0
    %1130 = vmatprep.subr.mxu0 0.0
    %1131 = vmatpush1.msra.mxu0 0.0
    %1132 = vmatprep.subr.mxu0 0.0
    %1133 = vmatpush1.msra.mxu0 0.0
    %1134 = vmatprep.subr.mxu0 0.0
    %1135 = vmatpush1.msra.mxu0 0.0
    %1136 = vmatprep.subr.mxu0 0.0
    %1137 = vmatpush1.msra.mxu0 0.0
    %1138 = vmatprep.subr.mxu0 0.0
    %1139 = vmatpush1.msra.mxu0 0.0
    %1140 = vmatprep.subr.mxu0 0.0
    %1141 = vmatpush1.msra.mxu0 0.0
    %1142 = vmatprep.subr.mxu0 0.0
    %1143 = vmatpush1.msra.mxu0 0.0
    %1144 = vmatprep.subr.mxu0 0.0
    %1145 = vmatpush1.msra.mxu0 0.0
    %1146 = vmatprep.subr.mxu0 0.0
    %1147 = vmatpush1.msra.mxu0 0.0
    %1148 = vmatprep.subr.mxu0 0.0
    %1149 = vmatpush1.msra.mxu0 0.0
    %1150 = vmatprep.subr.mxu0 0.0
    %1151 = vmatpush1.msra.mxu0 0.0
    %1152 = vmatprep.subr.mxu0 0.0
    %1153 = vmatpush1.msra.mxu0 0.0
    %1154 = vmatprep.subr.mxu0 0.0
    %1155 = vmatpush1.msra.mxu0 0.0
    %1156 = vmatprep.subr.mxu0 0.0
    %1157 = vmatpush1.msra.mxu0 0.0
    %1158 = vmatprep.subr.mxu0 0.0
    %1159 = vmatpush1.msra.mxu0 0.0
    %1160 = vmatprep.subr.mxu0 0.0
    %1161 = vmatpush1.msra.mxu0 0.0
    %1162 = vmatprep.mubr.f32.mxu0 0.0
    %1163 = vmatmul.mubr.f32.gmra.mrb[0].mxu0 %v1093
    %v1164 = vpop.f32.mrb[0].mxu0
    %v1165 = vadd.f32 0.0, %v1164
    %v1166 = vpop.f32.mrb[0].mxu0
    %1167 = vmatprep.mubr.f32.mxu0 0.0
    %1168 = vmatmul.mubr.f32.gmra.mrb[0].mxu0 %v1096
    %v1169 = vpop.f32.mrb[0].mxu0
    %v1170 = vadd.f32 0.0, %v1169
    %v1171 = vpop.f32.mrb[0].mxu0
    %1172 = vdwg.mxu0
    %v1173 = vlaneseq
    %v1174 = vshrl.u32 %v1173, 7
    %v1175 = vsub.s32 2, %v1174
    %v1176 = vrot.slane %v1046, %v1175
    %v1177 = vadd.f32 %v1165, %v1176
    %v1178 = vadd.f32 %v1170, %v1176
    %v1179 = vlaneseq
    %v1180 = vshrl.u32 %v1179, 7
    %v1181 = vsub.s32 3, %v1180
    %v1182 = vrot.slane %v1046, %v1181
    %1184 = vrot.lane.b32.xlu0 %v1182, 32
    %v1185 = vpop.permute.xlu0 %1184
    %v1187 = vadd.f32 %v1165, %v1185
    %v1188 = vadd.f32 %v1170, %v1185
    %v1189 = vlaneseq
    %v1190 = vshrl.u32 %v1189, 7
    %v1191 = vsub.s32 4, %v1190
    %v1192 = vrot.slane %v1046, %v1191
    %1194 = vrot.lane.b32.xlu0 %v1192, 64
    %v1195 = vpop.permute.xlu0 %1194
    %v1197 = vadd.f32 %v1165, %v1195
    %v1198 = vadd.f32 %v1170, %v1195
    %1200 = vrot.lane.b32.xlu0 %v1187, 96
    %v1201 = vpop.permute.xlu0 %1200
    %v1203 = vsel %vm155, %v1177, 0
    %v1205 = vsel %vm155, %v1201, 0
    %1207 = vmatprep.subr.mxu0 0.0
    %1208 = vmatpush1.xpose.msra.mxu0 %v1205
    %1209 = vmatprep.subr.mxu0 0.0
    %1210 = vmatpush1.xpose.msra.mxu0 0.0
    %1211 = vmatprep.subr.mxu0 0.0
    %1212 = vmatpush1.xpose.msra.mxu0 0.0
    %1213 = vmatprep.subr.mxu0 0.0
    %1214 = vmatpush1.xpose.msra.mxu0 0.0
    %1215 = vmatprep.subr.mxu0 0.0
    %1216 = vmatpush1.xpose.msra.mxu0 0.0
    %1217 = vmatprep.subr.mxu0 0.0
    %1218 = vmatpush1.xpose.msra.mxu0 0.0
    %1219 = vmatprep.subr.mxu0 0.0
    %1220 = vmatpush1.xpose.msra.mxu0 0.0
    %1221 = vmatprep.subr.mxu0 0.0
    %1222 = vmatpush1.xpose.msra.mxu0 0.0
    %1223 = vmatprep.subr.mxu0 0.0
    %1224 = vmatpush1.xpose.msra.mxu0 0.0
    %1225 = vmatprep.subr.mxu0 0.0
    %1226 = vmatpush1.xpose.msra.mxu0 0.0
    %1227 = vmatprep.subr.mxu0 0.0
    %1228 = vmatpush1.xpose.msra.mxu0 0.0
    %1229 = vmatprep.subr.mxu0 0.0
    %1230 = vmatpush1.xpose.msra.mxu0 0.0
    %1231 = vmatprep.subr.mxu0 0.0
    %1232 = vmatpush1.xpose.msra.mxu0 0.0
    %1233 = vmatprep.subr.mxu0 0.0
    %1234 = vmatpush1.xpose.msra.mxu0 0.0
    %1235 = vmatprep.subr.mxu0 0.0
    %1236 = vmatpush1.xpose.msra.mxu0 0.0
    %1237 = vmatprep.subr.mxu0 0.0
    %1238 = vmatpush1.xpose.msra.mxu0 0.0
    %1239 = vmatprep.subr.mxu0 0.0
    %1240 = vmatpush1.xpose.msra.mxu0 0.0
    %1241 = vmatprep.subr.mxu0 0.0
    %1242 = vmatpush1.xpose.msra.mxu0 0.0
    %1243 = vmatprep.subr.mxu0 0.0
    %1244 = vmatpush1.xpose.msra.mxu0 0.0
    %1245 = vmatprep.subr.mxu0 0.0
    %1246 = vmatpush1.xpose.msra.mxu0 0.0
    %1247 = vmatprep.subr.mxu0 0.0
    %1248 = vmatpush1.xpose.msra.mxu0 0.0
    %1249 = vmatprep.subr.mxu0 0.0
    %1250 = vmatpush1.xpose.msra.mxu0 0.0
    %1251 = vmatprep.subr.mxu0 0.0
    %1252 = vmatpush1.xpose.msra.mxu0 0.0
    %1253 = vmatprep.subr.mxu0 0.0
    %1254 = vmatpush1.xpose.msra.mxu0 0.0
    %1255 = vmatprep.subr.mxu0 0.0
    %1256 = vmatpush1.xpose.msra.mxu0 0.0
    %1257 = vmatprep.subr.mxu0 0.0
    %1258 = vmatpush1.xpose.msra.mxu0 0.0
    %1259 = vmatprep.subr.mxu0 0.0
    %1260 = vmatpush1.xpose.msra.mxu0 0.0
    %1261 = vmatprep.subr.mxu0 0.0
    %1262 = vmatpush1.xpose.msra.mxu0 0.0
    %1263 = vmatprep.subr.mxu0 0.0
    %1264 = vmatpush1.xpose.msra.mxu0 0.0
    %1265 = vmatprep.subr.mxu0 0.0
    %1266 = vmatpush1.xpose.msra.mxu0 0.0
    %1267 = vmatprep.subr.mxu0 0.0
    %1268 = vmatpush1.xpose.msra.mxu0 0.0
    %1269 = vmatprep.subr.mxu0 0.0
    %1270 = vmatpush1.xpose.msra.mxu0 0.0
    %1271 = vmatprep.mubr.f32.mxu0 0.0
    %1272 = vmatmul.mubr.f32.gmra.mrb[0].mxu0 %v1203
    %v1273 = vpop.f32.mrb[0].mxu0
    %v1274 = vadd.f32 0.0, %v1273
    %v1275 = vpop.f32.mrb[0].mxu0
    %1276 = vdwg.mxu0
    %1278 = vrot.lane.b32.xlu0 %v1188, 96
    %v1279 = vpop.permute.xlu0 %1278
    %v1281 = vsel %vm155, %v1178, 0
    %v1283 = vsel %vm155, %v1279, 0
    %1285 = vmatprep.subr.mxu0 0.0
    %1286 = vmatpush1.xpose.msra.mxu0 %v1283
    %1287 = vmatprep.subr.mxu0 0.0
    %1288 = vmatpush1.xpose.msra.mxu0 0.0
    %1289 = vmatprep.subr.mxu0 0.0
    %1290 = vmatpush1.xpose.msra.mxu0 0.0
    %1291 = vmatprep.subr.mxu0 0.0
    %1292 = vmatpush1.xpose.msra.mxu0 0.0
    %1293 = vmatprep.subr.mxu0 0.0
    %1294 = vmatpush1.xpose.msra.mxu0 0.0
    %1295 = vmatprep.subr.mxu0 0.0
    %1296 = vmatpush1.xpose.msra.mxu0 0.0
    %1297 = vmatprep.subr.mxu0 0.0
    %1298 = vmatpush1.xpose.msra.mxu0 0.0
    %1299 = vmatprep.subr.mxu0 0.0
    %1300 = vmatpush1.xpose.msra.mxu0 0.0
    %1301 = vmatprep.subr.mxu0 0.0
    %1302 = vmatpush1.xpose.msra.mxu0 0.0
    %1303 = vmatprep.subr.mxu0 0.0
    %1304 = vmatpush1.xpose.msra.mxu0 0.0
    %1305 = vmatprep.subr.mxu0 0.0
    %1306 = vmatpush1.xpose.msra.mxu0 0.0
    %1307 = vmatprep.subr.mxu0 0.0
    %1308 = vmatpush1.xpose.msra.mxu0 0.0
    %1309 = vmatprep.subr.mxu0 0.0
    %1310 = vmatpush1.xpose.msra.mxu0 0.0
    %1311 = vmatprep.subr.mxu0 0.0
    %1312 = vmatpush1.xpose.msra.mxu0 0.0
    %1313 = vmatprep.subr.mxu0 0.0
    %1314 = vmatpush1.xpose.msra.mxu0 0.0
    %1315 = vmatprep.subr.mxu0 0.0
    %1316 = vmatpush1.xpose.msra.mxu0 0.0
    %1317 = vmatprep.subr.mxu0 0.0
    %1318 = vmatpush1.xpose.msra.mxu0 0.0
    %1319 = vmatprep.subr.mxu0 0.0
    %1320 = vmatpush1.xpose.msra.mxu0 0.0
    %1321 = vmatprep.subr.mxu0 0.0
    %1322 = vmatpush1.xpose.msra.mxu0 0.0
    %1323 = vmatprep.subr.mxu0 0.0
    %1324 = vmatpush1.xpose.msra.mxu0 0.0
    %1325 = vmatprep.subr.mxu0 0.0
    %1326 = vmatpush1.xpose.msra.mxu0 0.0
    %1327 = vmatprep.subr.mxu0 0.0
    %1328 = vmatpush1.xpose.msra.mxu0 0.0
    %1329 = vmatprep.subr.mxu0 0.0
    %1330 = vmatpush1.xpose.msra.mxu0 0.0
    %1331 = vmatprep.subr.mxu0 0.0
    %1332 = vmatpush1.xpose.msra.mxu0 0.0
    %1333 = vmatprep.subr.mxu0 0.0
    %1334 = vmatpush1.xpose.msra.mxu0 0.0
    %1335 = vmatprep.subr.mxu0 0.0
    %1336 = vmatpush1.xpose.msra.mxu0 0.0
    %1337 = vmatprep.subr.mxu0 0.0
    %1338 = vmatpush1.xpose.msra.mxu0 0.0
    %1339 = vmatprep.subr.mxu0 0.0
    %1340 = vmatpush1.xpose.msra.mxu0 0.0
    %1341 = vmatprep.subr.mxu0 0.0
    %1342 = vmatpush1.xpose.msra.mxu0 0.0
    %1343 = vmatprep.subr.mxu0 0.0
    %1344 = vmatpush1.xpose.msra.mxu0 0.0
    %1345 = vmatprep.subr.mxu0 0.0
    %1346 = vmatpush1.xpose.msra.mxu0 0.0
    %1347 = vmatprep.subr.mxu0 0.0
    %1348 = vmatpush1.xpose.msra.mxu0 0.0
    %1349 = vmatprep.mubr.f32.mxu0 0.0
    %1350 = vmatmul.mubr.f32.gmra.mrb[0].mxu0 %v1281
    %v1351 = vpop.f32.mrb[0].mxu0
    %v1352 = vadd.f32 0.0, %v1351
    %v1353 = vpop.f32.mrb[0].mxu0
    %1354 = vdwg.mxu0
    %v1355 = vmul.f32 %v1274, 0.17677669
    %v1356 = vmul.f32 %v1352, 0.17677669
    %v1357 = vadd.f32 %v1355, %v523
    %v1358 = vadd.f32 %v1356, %v527
    %v1359 = vsel %vm532, %v1357, -inf
    %1360 = vmax.xlane.f32.xlu0 %v1359
    %v1361 = vpop.xlane.xlu0 %1360
    %v1362 = vsel %vm532, %v1358, -inf
    %1363 = vmax.xlane.f32.xlu0 %v1362
    %v1364 = vpop.xlane.xlu0 %1363
    %v1365 = vsub.f32 %v1357, %v1361
    %v1366 = vsub.f32 %v1358, %v1364
    %v1367 = vmul.f32 %v1365, 1.442695
    %v1368 = vpow.pop %v1367
    %v1369 = vmul.f32 %v1366, 1.442695
    %v1370 = vpow.pop %v1369
    %v1371 = vsel %vm532, %v1368, 0.0
    %1372 = vadd.xlane.f32.xlu0 %v1371
    %v1373 = vpop.xlane.xlu0 %1372
    %v1374 = vsel %vm532, %v1370, 0.0
    %1375 = vadd.xlane.f32.xlu0 %v1374
    %v1376 = vpop.xlane.xlu0 %1375
    %v1377 = vrcp.pop %v1373
    %v1378 = vrcp.pop %v1376
    %v1379 = vmul.f32 %v1368, %v1377
    %v1380 = vmul.f32 %v1370, %v1378
    %s1381 = scalar_lea.vmem %s14, 16
    %1382 = vst.msk [vmem:[%s1381] sm:$0xff] %vm532, %v1379
    %1383 = vst.msk [vmem:[%s1381 + $0x8] sm:$0xff] %vm532, %v1380
    %1385 = vrot.lane.b32.xlu0 %v1197, 64
    %v1386 = vpop.permute.xlu0 %1385
    %v1389 = vsel %vm532, %v1379, 0
    %1391 = vmatprep.subr.mxu0 0.0
    %1392 = vmatpush1.msra.mxu0 %v1386
    %1393 = vmatprep.subr.mxu0 0.0
    %1394 = vmatpush1.msra.mxu0 0.0
    %1395 = vmatprep.subr.mxu0 0.0
    %1396 = vmatpush1.msra.mxu0 0.0
    %1397 = vmatprep.subr.mxu0 0.0
    %1398 = vmatpush1.msra.mxu0 0.0
    %1399 = vmatprep.subr.mxu0 0.0
    %1400 = vmatpush1.msra.mxu0 0.0
    %1401 = vmatprep.subr.mxu0 0.0
    %1402 = vmatpush1.msra.mxu0 0.0
    %1403 = vmatprep.subr.mxu0 0.0
    %1404 = vmatpush1.msra.mxu0 0.0
    %1405 = vmatprep.subr.mxu0 0.0
    %1406 = vmatpush1.msra.mxu0 0.0
    %1407 = vmatprep.subr.mxu0 0.0
    %1408 = vmatpush1.msra.mxu0 0.0
    %1409 = vmatprep.subr.mxu0 0.0
    %1410 = vmatpush1.msra.mxu0 0.0
    %1411 = vmatprep.subr.mxu0 0.0
    %1412 = vmatpush1.msra.mxu0 0.0
    %1413 = vmatprep.subr.mxu0 0.0
    %1414 = vmatpush1.msra.mxu0 0.0
    %1415 = vmatprep.subr.mxu0 0.0
    %1416 = vmatpush1.msra.mxu0 0.0
    %1417 = vmatprep.subr.mxu0 0.0
    %1418 = vmatpush1.msra.mxu0 0.0
    %1419 = vmatprep.subr.mxu0 0.0
    %1420 = vmatpush1.msra.mxu0 0.0
    %1421 = vmatprep.subr.mxu0 0.0
    %1422 = vmatpush1.msra.mxu0 0.0
    %1423 = vmatprep.subr.mxu0 0.0
    %1424 = vmatpush1.msra.mxu0 0.0
    %1425 = vmatprep.subr.mxu0 0.0
    %1426 = vmatpush1.msra.mxu0 0.0
    %1427 = vmatprep.subr.mxu0 0.0
    %1428 = vmatpush1.msra.mxu0 0.0
    %1429 = vmatprep.subr.mxu0 0.0
    %1430 = vmatpush1.msra.mxu0 0.0
    %1431 = vmatprep.subr.mxu0 0.0
    %1432 = vmatpush1.msra.mxu0 0.0
    %1433 = vmatprep.subr.mxu0 0.0
    %1434 = vmatpush1.msra.mxu0 0.0
    %1435 = vmatprep.subr.mxu0 0.0
    %1436 = vmatpush1.msra.mxu0 0.0
    %1437 = vmatprep.subr.mxu0 0.0
    %1438 = vmatpush1.msra.mxu0 0.0
    %1439 = vmatprep.subr.mxu0 0.0
    %1440 = vmatpush1.msra.mxu0 0.0
    %1441 = vmatprep.subr.mxu0 0.0
    %1442 = vmatpush1.msra.mxu0 0.0
    %1443 = vmatprep.subr.mxu0 0.0
    %1444 = vmatpush1.msra.mxu0 0.0
    %1445 = vmatprep.subr.mxu0 0.0
    %1446 = vmatpush1.msra.mxu0 0.0
    %1447 = vmatprep.subr.mxu0 0.0
    %1448 = vmatpush1.msra.mxu0 0.0
    %1449 = vmatprep.subr.mxu0 0.0
    %1450 = vmatpush1.msra.mxu0 0.0
    %1451 = vmatprep.subr.mxu0 0.0
    %1452 = vmatpush1.msra.mxu0 0.0
    %1453 = vmatprep.subr.mxu0 0.0
    %1454 = vmatpush1.msra.mxu0 0.0
    %1455 = vmatprep.mubr.f32.mxu0 0.0
    %1456 = vmatmul.mubr.f32.gmra.mrb[0].mxu0 %v1389
    %v1457 = vpop.f32.mrb[0].mxu0
    %v1458 = vadd.f32 0.0, %v1457
    %v1459 = vpop.f32.mrb[0].mxu0
    %1460 = vdwg.mxu0
    %1462 = vrot.lane.b32.xlu0 %v1198, 64
    %v1463 = vpop.permute.xlu0 %1462
    %v1466 = vsel %vm532, %v1380, 0
    %1468 = vmatprep.subr.mxu0 0.0
    %1469 = vmatpush1.msra.mxu0 %v1463
    %1470 = vmatprep.subr.mxu0 0.0
    %1471 = vmatpush1.msra.mxu0 0.0
    %1472 = vmatprep.subr.mxu0 0.0
    %1473 = vmatpush1.msra.mxu0 0.0
    %1474 = vmatprep.subr.mxu0 0.0
    %1475 = vmatpush1.msra.mxu0 0.0
    %1476 = vmatprep.subr.mxu0 0.0
    %1477 = vmatpush1.msra.mxu0 0.0
    %1478 = vmatprep.subr.mxu0 0.0
    %1479 = vmatpush1.msra.mxu0 0.0
    %1480 = vmatprep.subr.mxu0 0.0
    %1481 = vmatpush1.msra.mxu0 0.0
    %1482 = vmatprep.subr.mxu0 0.0
    %1483 = vmatpush1.msra.mxu0 0.0
    %1484 = vmatprep.subr.mxu0 0.0
    %1485 = vmatpush1.msra.mxu0 0.0
    %1486 = vmatprep.subr.mxu0 0.0
    %1487 = vmatpush1.msra.mxu0 0.0
    %1488 = vmatprep.subr.mxu0 0.0
    %1489 = vmatpush1.msra.mxu0 0.0
    %1490 = vmatprep.subr.mxu0 0.0
    %1491 = vmatpush1.msra.mxu0 0.0
    %1492 = vmatprep.subr.mxu0 0.0
    %1493 = vmatpush1.msra.mxu0 0.0
    %1494 = vmatprep.subr.mxu0 0.0
    %1495 = vmatpush1.msra.mxu0 0.0
    %1496 = vmatprep.subr.mxu0 0.0
    %1497 = vmatpush1.msra.mxu0 0.0
    %1498 = vmatprep.subr.mxu0 0.0
    %1499 = vmatpush1.msra.mxu0 0.0
    %1500 = vmatprep.subr.mxu0 0.0
    %1501 = vmatpush1.msra.mxu0 0.0
    %1502 = vmatprep.subr.mxu0 0.0
    %1503 = vmatpush1.msra.mxu0 0.0
    %1504 = vmatprep.subr.mxu0 0.0
    %1505 = vmatpush1.msra.mxu0 0.0
    %1506 = vmatprep.subr.mxu0 0.0
    %1507 = vmatpush1.msra.mxu0 0.0
    %1508 = vmatprep.subr.mxu0 0.0
    %1509 = vmatpush1.msra.mxu0 0.0
    %1510 = vmatprep.subr.mxu0 0.0
    %1511 = vmatpush1.msra.mxu0 0.0
    %1512 = vmatprep.subr.mxu0 0.0
    %1513 = vmatpush1.msra.mxu0 0.0
    %1514 = vmatprep.subr.mxu0 0.0
    %1515 = vmatpush1.msra.mxu0 0.0
    %1516 = vmatprep.subr.mxu0 0.0
    %1517 = vmatpush1.msra.mxu0 0.0
    %1518 = vmatprep.subr.mxu0 0.0
    %1519 = vmatpush1.msra.mxu0 0.0
    %1520 = vmatprep.subr.mxu0 0.0
    %1521 = vmatpush1.msra.mxu0 0.0
    %1522 = vmatprep.subr.mxu0 0.0
    %1523 = vmatpush1.msra.mxu0 0.0
    %1524 = vmatprep.subr.mxu0 0.0
    %1525 = vmatpush1.msra.mxu0 0.0
    %1526 = vmatprep.subr.mxu0 0.0
    %1527 = vmatpush1.msra.mxu0 0.0
    %1528 = vmatprep.subr.mxu0 0.0
    %1529 = vmatpush1.msra.mxu0 0.0
    %1530 = vmatprep.subr.mxu0 0.0
    %1531 = vmatpush1.msra.mxu0 0.0
    %1532 = vmatprep.mubr.f32.mxu0 0.0
    %1533 = vmatmul.mubr.f32.gmra.mrb[0].mxu0 %v1466
    %v1534 = vpop.f32.mrb[0].mxu0
    %v1535 = vadd.f32 0.0, %v1534
    %v1536 = vpop.f32.mrb[0].mxu0
    %1537 = vdwg.mxu0
    %v1539 = vsel %vm155, %v1458, 0
    %v1542 = vsel %vm155, %v1535, 0
    %1544 = vmatprep.subr.mxu0 0.0
    %1545 = vmatpush1.msra.mxu0 %v1027
    %1546 = vmatprep.subr.mxu0 0.0
    %1547 = vmatpush1.msra.mxu0 %v1028
    %1548 = vmatprep.subr.mxu0 0.0
    %1549 = vmatpush1.msra.mxu0 %v1029
    %1550 = vmatprep.subr.mxu0 0.0
    %1551 = vmatpush1.msra.mxu0 %v1030
    %1552 = vmatprep.subr.mxu0 0.0
    %1553 = vmatpush1.msra.mxu0 0.0
    %1554 = vmatprep.subr.mxu0 0.0
    %1555 = vmatpush1.msra.mxu0 0.0
    %1556 = vmatprep.subr.mxu0 0.0
    %1557 = vmatpush1.msra.mxu0 0.0
    %1558 = vmatprep.subr.mxu0 0.0
    %1559 = vmatpush1.msra.mxu0 0.0
    %1560 = vmatprep.subr.mxu0 0.0
    %1561 = vmatpush1.msra.mxu0 0.0
    %1562 = vmatprep.subr.mxu0 0.0
    %1563 = vmatpush1.msra.mxu0 0.0
    %1564 = vmatprep.subr.mxu0 0.0
    %1565 = vmatpush1.msra.mxu0 0.0
    %1566 = vmatprep.subr.mxu0 0.0
    %1567 = vmatpush1.msra.mxu0 0.0
    %1568 = vmatprep.subr.mxu0 0.0
    %1569 = vmatpush1.msra.mxu0 0.0
    %1570 = vmatprep.subr.mxu0 0.0
    %1571 = vmatpush1.msra.mxu0 0.0
    %1572 = vmatprep.subr.mxu0 0.0
    %1573 = vmatpush1.msra.mxu0 0.0
    %1574 = vmatprep.subr.mxu0 0.0
    %1575 = vmatpush1.msra.mxu0 0.0
    %1576 = vmatprep.subr.mxu0 0.0
    %1577 = vmatpush1.msra.mxu0 0.0
    %1578 = vmatprep.subr.mxu0 0.0
    %1579 = vmatpush1.msra.mxu0 0.0
    %1580 = vmatprep.subr.mxu0 0.0
    %1581 = vmatpush1.msra.mxu0 0.0
    %1582 = vmatprep.subr.mxu0 0.0
    %1583 = vmatpush1.msra.mxu0 0.0
    %1584 = vmatprep.subr.mxu0 0.0
    %1585 = vmatpush1.msra.mxu0 0.0
    %1586 = vmatprep.subr.mxu0 0.0
    %1587 = vmatpush1.msra.mxu0 0.0
    %1588 = vmatprep.subr.mxu0 0.0
    %1589 = vmatpush1.msra.mxu0 0.0
    %1590 = vmatprep.subr.mxu0 0.0
    %1591 = vmatpush1.msra.mxu0 0.0
    %1592 = vmatprep.subr.mxu0 0.0
    %1593 = vmatpush1.msra.mxu0 0.0
    %1594 = vmatprep.subr.mxu0 0.0
    %1595 = vmatpush1.msra.mxu0 0.0
    %1596 = vmatprep.subr.mxu0 0.0
    %1597 = vmatpush1.msra.mxu0 0.0
    %1598 = vmatprep.subr.mxu0 0.0
    %1599 = vmatpush1.msra.mxu0 0.0
    %1600 = vmatprep.subr.mxu0 0.0
    %1601 = vmatpush1.msra.mxu0 0.0
    %1602 = vmatprep.subr.mxu0 0.0
    %1603 = vmatpush1.msra.mxu0 0.0
    %1604 = vmatprep.subr.mxu0 0.0
    %1605 = vmatpush1.msra.mxu0 0.0
    %1606 = vmatprep.subr.mxu0 0.0
    %1607 = vmatpush1.msra.mxu0 0.0
    %1608 = vmatprep.mubr.f32.mxu0 0.0
    %1609 = vmatmul.mubr.f32.gmra.mrb[0].mxu0 %v1539
    %v1610 = vpop.f32.mrb[0].mxu0
    %v1611 = vadd.f32 0.0, %v1610
    %v1612 = vpop.f32.mrb[0].mxu0
    %1613 = vmatprep.mubr.f32.mxu0 0.0
    %1614 = vmatmul.mubr.f32.gmra.mrb[0].mxu0 %v1542
    %v1615 = vpop.f32.mrb[0].mxu0
    %v1616 = vadd.f32 0.0, %v1615
    %v1617 = vpop.f32.mrb[0].mxu0
    %1618 = vdwg.mxu0
    %v1619 = vadd.f32 %v1019, %v1611
    %v1620 = vadd.f32 %v1020, %v1616
    %v1621 = vlaneseq
    %v1622 = vshrl.u32 %v1621, 7
    %v1623 = vsub.s32 5, %v1622
    %v1624 = vrot.slane %v1046, %v1623
    %v1625 = vadd.f32 %v1619, %v1624
    %v1626 = vadd.f32 %v1620, %v1624
    %v1627 = vsel %vm155, %v1625, 0.0
    %1628 = vadd.xlane.f32.xlu0 %v1627
    %v1629 = vpop.xlane.xlu0 %1628
    %v1630 = vsel %vm155, %v1626, 0.0
    %1631 = vadd.xlane.f32.xlu0 %v1630
    %v1632 = vpop.xlane.xlu0 %1631
    %v1633 = vmul.f32 %v1629, %v218
    %v1634 = vmul.f32 %v1632, %v218
    %v1635 = vmul.f32 %v1625, %v1625
    %v1636 = vmul.f32 %v1626, %v1626
    %v1637 = vsel %vm155, %v1635, 0.0
    %1638 = vadd.xlane.f32.xlu0 %v1637
    %v1639 = vpop.xlane.xlu0 %1638
    %v1640 = vsel %vm155, %v1636, 0.0
    %1641 = vadd.xlane.f32.xlu0 %v1640
    %v1642 = vpop.xlane.xlu0 %1641
    %v1643 = vmul.f32 %v1639, %v218
    %v1644 = vmul.f32 %v1642, %v218
    %v1645 = vmul.f32 %v1633, %v1633
    %v1646 = vmul.f32 %v1634, %v1634
    %v1647 = vsub.f32 %v1643, %v1645
    %v1648 = vsub.f32 %v1644, %v1646
    %v1649 = vsub.f32 %v1625, %v1633
    %v1650 = vsub.f32 %v1626, %v1634
    %v1651 = vadd.f32 %v1647, 1e-05
    %v1652 = vadd.f32 %v1648, 1e-05
    %v1653 = vrsqrt.pop %v1651
    %v1654 = vrsqrt.pop %v1652
    %v1655 = vmul.f32 %v1649, %v1653
    %v1656 = vmul.f32 %v1650, %v1654
    %v1657 = vlaneseq
    %v1658 = vshrl.u32 %v1657, 7
    %v1659 = vsub.s32 6, %v1658
    %v1660 = vrot.slane %v1046, %v1659
    %v1661 = vmul.f32 %v1655, %v1660
    %v1662 = vmul.f32 %v1656, %v1660
    %v1663 = vlaneseq
    %v1664 = vshrl.u32 %v1663, 7
    %v1665 = vsub.s32 7, %v1664
    %v1666 = vrot.slane %v1046, %v1665
    %v1667 = vadd.f32 %v1661, %v1666
    %v1668 = vadd.f32 %v1662, %v1666
    %v1670 = vlaneseq
    %v1671 = vshrl.u32 %v1670, 7
    %v1672 = vsub.s32 0, %v1671
    %v1673 = vrot.slane %v1049, %v1672
    %v1676 = vsel %vm155, %v1667, 0
    %v1679 = vsel %vm155, %v1668, 0
    %1681 = vmatprep.subr.mxu0 0.0
    %1682 = vmatpush1.msra.mxu0 %v1032
    %1683 = vmatprep.subr.mxu0 0.0
    %1684 = vmatpush1.msra.mxu0 %v1033
    %1685 = vmatprep.subr.mxu0 0.0
    %1686 = vmatpush1.msra.mxu0 %v1034
    %1687 = vmatprep.subr.mxu0 0.0
    %1688 = vmatpush1.msra.mxu0 %v1035
    %1689 = vmatprep.subr.mxu0 0.0
    %1690 = vmatpush1.msra.mxu0 0.0
    %1691 = vmatprep.subr.mxu0 0.0
    %1692 = vmatpush1.msra.mxu0 0.0
    %1693 = vmatprep.subr.mxu0 0.0
    %1694 = vmatpush1.msra.mxu0 0.0
    %1695 = vmatprep.subr.mxu0 0.0
    %1696 = vmatpush1.msra.mxu0 0.0
    %1697 = vmatprep.subr.mxu0 0.0
    %1698 = vmatpush1.msra.mxu0 0.0
    %1699 = vmatprep.subr.mxu0 0.0
    %1700 = vmatpush1.msra.mxu0 0.0
    %1701 = vmatprep.subr.mxu0 0.0
    %1702 = vmatpush1.msra.mxu0 0.0
    %1703 = vmatprep.subr.mxu0 0.0
    %1704 = vmatpush1.msra.mxu0 0.0
    %1705 = vmatprep.subr.mxu0 0.0
    %1706 = vmatpush1.msra.mxu0 0.0
    %1707 = vmatprep.subr.mxu0 0.0
    %1708 = vmatpush1.msra.mxu0 0.0
    %1709 = vmatprep.subr.mxu0 0.0
    %1710 = vmatpush1.msra.mxu0 0.0
    %1711 = vmatprep.subr.mxu0 0.0
    %1712 = vmatpush1.msra.mxu0 0.0
    %1713 = vmatprep.subr.mxu0 0.0
    %1714 = vmatpush1.msra.mxu0 0.0
    %1715 = vmatprep.subr.mxu0 0.0
    %1716 = vmatpush1.msra.mxu0 0.0
    %1717 = vmatprep.subr.mxu0 0.0
    %1718 = vmatpush1.msra.mxu0 0.0
    %1719 = vmatprep.subr.mxu0 0.0
    %1720 = vmatpush1.msra.mxu0 0.0
    %1721 = vmatprep.subr.mxu0 0.0
    %1722 = vmatpush1.msra.mxu0 0.0
    %1723 = vmatprep.subr.mxu0 0.0
    %1724 = vmatpush1.msra.mxu0 0.0
    %1725 = vmatprep.subr.mxu0 0.0
    %1726 = vmatpush1.msra.mxu0 0.0
    %1727 = vmatprep.subr.mxu0 0.0
    %1728 = vmatpush1.msra.mxu0 0.0
    %1729 = vmatprep.subr.mxu0 0.0
    %1730 = vmatpush1.msra.mxu0 0.0
    %1731 = vmatprep.subr.mxu0 0.0
    %1732 = vmatpush1.msra.mxu0 0.0
    %1733 = vmatprep.subr.mxu0 0.0
    %1734 = vmatpush1.msra.mxu0 0.0
    %1735 = vmatprep.subr.mxu0 0.0
    %1736 = vmatpush1.msra.mxu0 0.0
    %1737 = vmatprep.subr.mxu0 0.0
    %1738 = vmatpush1.msra.mxu0 0.0
    %1739 = vmatprep.subr.mxu0 0.0
    %1740 = vmatpush1.msra.mxu0 0.0
    %1741 = vmatprep.subr.mxu0 0.0
    %1742 = vmatpush1.msra.mxu0 0.0
    %1743 = vmatprep.subr.mxu0 0.0
    %1744 = vmatpush1.msra.mxu0 0.0
    %1745 = vmatprep.mubr.f32.mxu0 0.0
    %1746 = vmatmul.mubr.f32.gmra.mrb[0].mxu0 %v1676
    %v1747 = vpop.f32.mrb[0].mxu0
    %v1748 = vadd.f32 %v1673, %v1747
    %v1749 = vpop.f32.mrb[0].mxu0
    %1750 = vmatprep.mubr.f32.mxu0 0.0
    %1751 = vmatmul.mubr.f32.gmra.mrb[0].mxu0 %v1679
    %v1752 = vpop.f32.mrb[0].mxu0
    %v1753 = vadd.f32 %v1673, %v1752
    %v1754 = vpop.f32.mrb[0].mxu0
    %1755 = vdwg.mxu0
    %v1756 = vmax.f32 %v1748, 0.0
    %v1757 = vmax.f32 %v1753, 0.0
    %v1759 = vsel %vm931, %v1756, 0
    %v1762 = vsel %vm931, %v1757, 0
    %1764 = vmatprep.subr.mxu0 0.0
    %1765 = vmatpush1.msra.mxu0 %v1037
    %1766 = vmatprep.subr.mxu0 0.0
    %1767 = vmatpush1.msra.mxu0 %v1038
    %1768 = vmatprep.subr.mxu0 0.0
    %1769 = vmatpush1.msra.mxu0 %v1039
    %1770 = vmatprep.subr.mxu0 0.0
    %1771 = vmatpush1.msra.mxu0 %v1040
    %1772 = vmatprep.subr.mxu0 0.0
    %1773 = vmatpush1.msra.mxu0 %v1041
    %1774 = vmatprep.subr.mxu0 0.0
    %1775 = vmatpush1.msra.mxu0 %v1042
    %1776 = vmatprep.subr.mxu0 0.0
    %1777 = vmatpush1.msra.mxu0 %v1043
    %1778 = vmatprep.subr.mxu0 0.0
    %1779 = vmatpush1.msra.mxu0 %v1044
    %1780 = vmatprep.subr.mxu0 0.0
    %1781 = vmatpush1.msra.mxu0 0.0
    %1782 = vmatprep.subr.mxu0 0.0
    %1783 = vmatpush1.msra.mxu0 0.0
    %1784 = vmatprep.subr.mxu0 0.0
    %1785 = vmatpush1.msra.mxu0 0.0
    %1786 = vmatprep.subr.mxu0 0.0
    %1787 = vmatpush1.msra.mxu0 0.0
    %1788 = vmatprep.subr.mxu0 0.0
    %1789 = vmatpush1.msra.mxu0 0.0
    %1790 = vmatprep.subr.mxu0 0.0
    %1791 = vmatpush1.msra.mxu0 0.0
    %1792 = vmatprep.subr.mxu0 0.0
    %1793 = vmatpush1.msra.mxu0 0.0
    %1794 = vmatprep.subr.mxu0 0.0
    %1795 = vmatpush1.msra.mxu0 0.0
    %1796 = vmatprep.subr.mxu0 0.0
    %1797 = vmatpush1.msra.mxu0 0.0
    %1798 = vmatprep.subr.mxu0 0.0
    %1799 = vmatpush1.msra.mxu0 0.0
    %1800 = vmatprep.subr.mxu0 0.0
    %1801 = vmatpush1.msra.mxu0 0.0
    %1802 = vmatprep.subr.mxu0 0.0
    %1803 = vmatpush1.msra.mxu0 0.0
    %1804 = vmatprep.subr.mxu0 0.0
    %1805 = vmatpush1.msra.mxu0 0.0
    %1806 = vmatprep.subr.mxu0 0.0
    %1807 = vmatpush1.msra.mxu0 0.0
    %1808 = vmatprep.subr.mxu0 0.0
    %1809 = vmatpush1.msra.mxu0 0.0
    %1810 = vmatprep.subr.mxu0 0.0
    %1811 = vmatpush1.msra.mxu0 0.0
    %1812 = vmatprep.subr.mxu0 0.0
    %1813 = vmatpush1.msra.mxu0 0.0
    %1814 = vmatprep.subr.mxu0 0.0
    %1815 = vmatpush1.msra.mxu0 0.0
    %1816 = vmatprep.subr.mxu0 0.0
    %1817 = vmatpush1.msra.mxu0 0.0
    %1818 = vmatprep.subr.mxu0 0.0
    %1819 = vmatpush1.msra.mxu0 0.0
    %1820 = vmatprep.subr.mxu0 0.0
    %1821 = vmatpush1.msra.mxu0 0.0
    %1822 = vmatprep.subr.mxu0 0.0
    %1823 = vmatpush1.msra.mxu0 0.0
    %1824 = vmatprep.subr.mxu0 0.0
    %1825 = vmatpush1.msra.mxu0 0.0
    %1826 = vmatprep.subr.mxu0 0.0
    %1827 = vmatpush1.msra.mxu0 0.0
    %1828 = vmatprep.mubr.f32.mxu0 0.0
    %1829 = vmatmul.mubr.f32.gmra.mrb[0].mxu0 %v1759
    %v1830 = vpop.f32.mrb[0].mxu0
    %v1831 = vadd.f32 0.0, %v1830
    %v1832 = vpop.f32.mrb[0].mxu0
    %1833 = vmatprep.mubr.f32.mxu0 0.0
    %1834 = vmatmul.mubr.f32.gmra.mrb[0].mxu0 %v1762
    %v1835 = vpop.f32.mrb[0].mxu0
    %v1836 = vadd.f32 0.0, %v1835
    %v1837 = vpop.f32.mrb[0].mxu0
    %1838 = vdwg.mxu0
    %v1839 = vadd.f32 %v1625, %v1831
    %v1840 = vadd.f32 %v1626, %v1836
    %v1841 = vlaneseq
    %v1842 = vshrl.u32 %v1841, 7
    %v1843 = vsub.s32 0, %v1842
    %v1844 = vrot.slane %v1047, %v1843
    %v1845 = vadd.f32 %v1839, %v1844
    %v1846 = vadd.f32 %v1840, %v1844
    %v1847 = vld [vmem:[%s10] sm:$0xff]
    %v1848 = vld [vmem:[%s10 + $0x8] sm:$0xff]
    %v1849 = vld [vmem:[%s10 + $0x10] sm:$0xff]
    %v1850 = vld [vmem:[%s10 + $0x18] sm:$0xff]
    %v1851 = vld [vmem:[%s11] sm:$0x1]
    %v1853 = vlaneseq
    %v1854 = vshrl.u32 %v1853, 7
    %v1855 = vsub.s32 0, %v1854
    %v1856 = vrot.slane %v1851, %v1855
    %v1860 = vrot.slane %v1846, 7
    %vm1861 = vcmask 1041409
    %v1862 = vsel %vm1861, %v1860, %v1845
    %v1863 = vsel %vm155, %v1862, 0
    %1865 = vmatprep.subr.mxu0 0.0
    %1866 = vmatpush1.msra.mxu0 %v1847
    %1867 = vmatprep.subr.mxu0 0.0
    %1868 = vmatpush1.msra.mxu0 %v1848
    %1869 = vmatprep.subr.mxu0 0.0
    %1870 = vmatpush1.msra.mxu0 %v1849
    %1871 = vmatprep.subr.mxu0 0.0
    %1872 = vmatpush1.msra.mxu0 %v1850
    %1873 = vmatprep.subr.mxu0 0.0
    %1874 = vmatpush1.msra.mxu0 0.0
    %1875 = vmatprep.subr.mxu0 0.0
    %1876 = vmatpush1.msra.mxu0 0.0
    %1877 = vmatprep.subr.mxu0 0.0
    %1878 = vmatpush1.msra.mxu0 0.0
    %1879 = vmatprep.subr.mxu0 0.0
    %1880 = vmatpush1.msra.mxu0 0.0
    %1881 = vmatprep.subr.mxu0 0.0
    %1882 = vmatpush1.msra.mxu0 0.0
    %1883 = vmatprep.subr.mxu0 0.0
    %1884 = vmatpush1.msra.mxu0 0.0
    %1885 = vmatprep.subr.mxu0 0.0
    %1886 = vmatpush1.msra.mxu0 0.0
    %1887 = vmatprep.subr.mxu0 0.0
    %1888 = vmatpush1.msra.mxu0 0.0
    %1889 = vmatprep.subr.mxu0 0.0
    %1890 = vmatpush1.msra.mxu0 0.0
    %1891 = vmatprep.subr.mxu0 0.0
    %1892 = vmatpush1.msra.mxu0 0.0
    %1893 = vmatprep.subr.mxu0 0.0
    %1894 = vmatpush1.msra.mxu0 0.0
    %1895 = vmatprep.subr.mxu0 0.0
    %1896 = vmatpush1.msra.mxu0 0.0
    %1897 = vmatprep.subr.mxu0 0.0
    %1898 = vmatpush1.msra.mxu0 0.0
    %1899 = vmatprep.subr.mxu0 0.0
    %1900 = vmatpush1.msra.mxu0 0.0
    %1901 = vmatprep.subr.mxu0 0.0
    %1902 = vmatpush1.msra.mxu0 0.0
    %1903 = vmatprep.subr.mxu0 0.0
    %1904 = vmatpush1.msra.mxu0 0.0
    %1905 = vmatprep.subr.mxu0 0.0
    %1906 = vmatpush1.msra.mxu0 0.0
    %1907 = vmatprep.subr.mxu0 0.0
    %1908 = vmatpush1.msra.mxu0 0.0
    %1909 = vmatprep.subr.mxu0 0.0
    %1910 = vmatpush1.msra.mxu0 0.0
    %1911 = vmatprep.subr.mxu0 0.0
    %1912 = vmatpush1.msra.mxu0 0.0
    %1913 = vmatprep.subr.mxu0 0.0
    %1914 = vmatpush1.msra.mxu0 0.0
    %1915 = vmatprep.subr.mxu0 0.0
    %1916 = vmatpush1.msra.mxu0 0.0
    %1917 = vmatprep.subr.mxu0 0.0
    %1918 = vmatpush1.msra.mxu0 0.0
    %1919 = vmatprep.subr.mxu0 0.0
    %1920 = vmatpush1.msra.mxu0 0.0
    %1921 = vmatprep.subr.mxu0 0.0
    %1922 = vmatpush1.msra.mxu0 0.0
    %1923 = vmatprep.subr.mxu0 0.0
    %1924 = vmatpush1.msra.mxu0 0.0
    %1925 = vmatprep.subr.mxu0 0.0
    %1926 = vmatpush1.msra.mxu0 0.0
    %1927 = vmatprep.subr.mxu0 0.0
    %1928 = vmatpush1.msra.mxu0 0.0
    %1929 = vmatprep.mubr.f32.mxu0 0.0
    %1930 = vmatmul.mubr.f32.gmra.mrb[0].mxu0 %v1863
    %v1931 = vpop.f32.mrb[0].mxu0
    %v1932 = vadd.f32 %v1856, %v1931
    %v1933 = vpop.f32.mrb[0].mxu0
    %1934 = vdwg.mxu0
    %vm1935 = vcmask 17408
    %1936 = vst.msk [vmem:[#allocation4] sm:$0x3] %vm1935, %v1932
    // Predicated region
    $region50: #{transformer_forward.1} parent=1 // pred_check
      _
    $region51: #{transformer_forward.1} parent=1 // pred_check_branch
      %1938 = sbr.rel (0) target = $region53
    $region52: #{transformer_forward.1} parent=1 // pred_region
      %s1940 = ssub.s32 256, 256
      %1941 = vsyncadd [#allocation3], %s1940
      %s1942 = sshll.u32 [#allocation2], 4
      %s1943 = int_to_ptr.vmem [resolvable:$true] %s1942
      %1948 = dma.vmem_to_hbm [thread:$0]  %s1943, 256, %s12, [#allocation3], 128, 128, 8
    $region53: #{transformer_forward.1} parent=1 // pred_fallthru
      _
    // Predicated region
    $region54: #{transformer_forward.1} parent=1 // pred_check
      _
    $region55: #{transformer_forward.1} parent=1 // pred_check_branch
      %1950 = sbr.rel (0) target = $region57
    $region56: #{transformer_forward.1} parent=1 // pred_region
      %s1952 = ssub.s32 32, 32
      %1953 = vsyncadd [#allocation5], %s1952
      %s1955 = sshll.u32 [#allocation4], 4
      %s1956 = int_to_ptr.vmem [resolvable:$true] %s1955
      %1958 = dma.vmem_to_hbm [thread:$0]  %s1956, 32, %s13, [#allocation5]
    $region57: #{transformer_forward.1} parent=1 // pred_fallthru
      _
    // Predicated region
    $region58: #{transformer_forward.1} parent=1 // pred_check
      _
    $region59: #{transformer_forward.1} parent=1 // pred_check_branch
      %1960 = sbr.rel (0) target = $region61
    $region60: #{transformer_forward.1} parent=1 // pred_region
      _
    $region61: #{transformer_forward.1} parent=1 // pred_fallthru
      _
    // Predicated region
    $region62: #{transformer_forward.1} parent=1 // pred_check
      _
    $region63: #{transformer_forward.1} parent=1 // pred_check_branch
      %1962 = sbr.rel (0) target = $region65
    $region64: #{transformer_forward.1} parent=1 // pred_region
      %1963 = dma.done [#allocation3], 256
    $region65: #{transformer_forward.1} parent=1 // pred_fallthru
      _
    // Predicated region
    $region66: #{transformer_forward.1} parent=1 // pred_check
      _
    $region67: #{transformer_forward.1} parent=1 // pred_check_branch
      %1965 = sbr.rel (0) target = $region69
    $region68: #{transformer_forward.1} parent=1 // pred_region
      %1966 = dma.done [#allocation5], 32
    $region69: #{transformer_forward.1} parent=1 // pred_fallthru
      _
    // Predicated region
    $region70: #{transformer_forward.1} parent=1 // pred_check
      _
    $region71: #{transformer_forward.1} parent=1 // pred_check_branch
      %1968 = sbr.rel (0) target = $region73
    $region72: #{transformer_forward.1} parent=1 // pred_region
      _
    $region73: #{transformer_forward.1} parent=1 // pred_fallthru
      _
    %1969 = vsyncpa [#allocation3], 1
    %1970 = vsyncpa [#allocation5], 1

</llo_original>
